<compile_context>
chip_gen: v7x
topology: tpu7x:2x2x1
jax: 0.10.0
libtpu: 0.0.40
codegen_flags: <defaults>
</compile_context>

<pallas_src>
import functools

import jax
import jax.numpy as jnp
from jax.experimental import pallas as pl
from jax.experimental.pallas import tpu as pltpu


_VMEM_SPEC = pl.BlockSpec(memory_space=pltpu.MemorySpace.VMEM)


# ----------------------------- Pallas kernels ------------------------------


def _conv_down_kernel(x_ref, m_ref, sw_ref, b_ref, out_ref):
    """Fused im2col + GEMM for Conv2d(Cin, Cout, 3, stride=2, padding=1).

    x_ref  : (B, Cin*H, W)        input (free NCHW reshape, single operand)
    m_ref  : (K, Cout*OH, Cin*H)  conv weights pre-folded with H selection/pad
    sw_ref : (K, W, OW)           0/1 stride-2 selection along W (handles W pad)
    b_ref  : (Cout*OH, 1)         bias repeated over OH
    out_ref: (B, Cout*OH, OW)     == NCHW (B, Cout, OH, OW) after a free reshape
    """
    B = x_ref.shape[0]
    K = sw_ref.shape[0]
    bias = b_ref[...]
    for b in range(B):                       # B tiny & static -> unrolled
        xb = x_ref[b]                        # (Cin*H, W)
        acc = jnp.zeros(out_ref.shape[1:], jnp.float32)
        for kw in range(K):                  # K=3, static -> unrolled
            # stride-2 (+ zero pad) selection along W, on the MXU:
            z = jnp.dot(xb, sw_ref[kw],
                        preferred_element_type=jnp.float32)           # (Cin*H, OW)
            # H selection + conv weights; contraction dim = Cin*H (=64):
            acc = acc + jnp.dot(m_ref[kw], z,
                                preferred_element_type=jnp.float32)   # (Cout*OH, OW)
        out_ref[b] = (acc + bias).astype(out_ref.dtype)


def _avgpool_kernel(x_ref, p_ref, out_ref):
    """AvgPool2d(2, 2) as a single MXU matmul.

    x_ref  : (B*C*OH, 2*W)  each row = the two input rows of one output row
    p_ref  : (2*W, OW)      0.25 at the four taps of each output column
    out_ref: (B*C*OH, OW)   == NCHW (B, C, OH, OW) after a free reshape
    """
    out_ref[...] = jnp.dot(
        x_ref[...], p_ref[...], preferred_element_type=jnp.float32
    ).astype(out_ref.dtype)


# ------------------------------ JAX wrappers --------------------------------


def _pack_conv_constants(weight, bias, H, W, stride, padding):
    """Repack Conv2d weights into selection / folded matrices.

    These depend only on the weights and the (static) geometry, so in a real
    model they are computed once at init time (they are just repacked weights).
    """
    Cout, Cin, K, _ = weight.shape
    OH = (H + 2 * padding - K) // stride + 1
    OW = (W + 2 * padding - K) // stride + 1
    f32 = jnp.float32

    # SW[kw, w, ow] = 1  iff  w == stride*ow + kw - padding   (zero pad on W)
    kw_i = jnp.arange(K)[:, None, None]
    w_i = jnp.arange(W)[None, :, None]
    ow_i = jnp.arange(OW)[None, None, :]
    SW = (w_i == stride * ow_i + kw_i - padding).astype(f32)          # (K, W, OW)

    # SH[kh, oh, h] = 1  iff  h == stride*oh + kh - padding   (zero pad on H)
    kh_i = jnp.arange(K)[:, None, None]
    oh_i = jnp.arange(OH)[None, :, None]
    h_i = jnp.arange(H)[None, None, :]
    SH = (h_i == stride * oh_i + kh_i - padding).astype(f32)          # (K, OH, H)

    # M[kw, co*OH+oh, ci*H+h] = sum_kh weight[co,ci,kh,kw] * SH[kh,oh,h]
    M = jnp.einsum("oigk,gph->kopih", weight.astype(f32), SH)
    M = M.reshape(K, Cout * OH, Cin * H)

    b2 = jnp.repeat(bias.astype(f32), OH).reshape(Cout * OH, 1)
    return M, SW, b2, OH, OW


@functools.partial(jax.jit, static_argnames=("stride", "padding"))
def conv_downsample2d(x, weight, bias, *, stride=2, padding=1):
    """use_conv=True path: Conv2d(dim, out_dim, 3, stride=2, padding=1)."""
    B, Cin, H, W = x.shape
    Cout, _, K, _ = weight.shape
    M, SW, b2, OH, OW = _pack_conv_constants(weight, bias, H, W, stride, padding)

    x2 = x.astype(jnp.float32).reshape(B, Cin * H, W)   # free, contiguous reshape

    cost = pl.CostEstimate(
        flops=2 * B * K * ((Cin * H) * W * OW + (Cout * OH) * (Cin * H) * OW),
        transcendentals=0,
        bytes_accessed=4 * (x2.size + M.size + SW.size + b2.size
                            + B * Cout * OH * OW),
    )
    out = pl.pallas_call(
        _conv_down_kernel,
        out_shape=jax.ShapeDtypeStruct((B, Cout * OH, OW), jnp.float32),
        in_specs=[_VMEM_SPEC, _VMEM_SPEC, _VMEM_SPEC, _VMEM_SPEC],
        out_specs=_VMEM_SPEC,
        cost_estimate=cost,
    )(x2, M, SW, b2)
    # (B, Cout*OH, OW) is already NCHW order — the reshape is free.
    return out.reshape(B, Cout, OH, OW)


@jax.jit
def avgpool_downsample2d(x):
    """use_conv=False path: AvgPool2d(2, 2) (floors odd sizes like PyTorch)."""
    B, C, H, W = x.shape
    OH, OW = H // 2, W // 2
    if (H % 2) or (W % 2):                   # PyTorch AvgPool2d(2,2) floors
        x = x[:, :, : 2 * OH, : 2 * OW]
        W = 2 * OW
    # Each row of x2 holds the two input rows feeding one output row.
    x2 = x.astype(jnp.float32).reshape(B * C * OH, 2 * W)   # free, contiguous

    # P[j, ow] = 0.25 at the four 2x2 taps of output column ow.
    j = jnp.arange(2 * W)[:, None] % W
    ow = jnp.arange(OW)[None, :]
    P = jnp.where((j == 2 * ow) | (j == 2 * ow + 1), 0.25, 0.0).astype(jnp.float32)

    cost = pl.CostEstimate(
        flops=2 * (B * C * OH) * (2 * W) * OW,
        transcendentals=0,
        bytes_accessed=4 * (x2.size + P.size + B * C * OH * OW),
    )
    out = pl.pallas_call(
        _avgpool_kernel,
        out_shape=jax.ShapeDtypeStruct((B * C * OH, OW), jnp.float32),
        in_specs=[_VMEM_SPEC, _VMEM_SPEC],
        out_specs=_VMEM_SPEC,
        cost_estimate=cost,
    )(x2, P)
    return out.reshape(B, C, OH, OW)         # free: already NCHW order


def downsample2d_forward(x, weight=None, bias=None, *, use_conv=True):
    """Forward of Downsample2d. x: (B, C, H, W) NCHW float32."""
    if use_conv:
        return conv_downsample2d(x, weight, bias)
    return avgpool_downsample2d(x)


# ----------------------------------- main ------------------------------------


if __name__ == "__main__":
    # Downsample2d(dim=4, out_dim=8, use_conv=True): (2, 4, 16, 16) -> (2, 8, 8, 8)
    B, Cin, H, W = 2, 4, 16, 16
    Cout, K = 8, 3

    key = jax.random.PRNGKey(0)
    k1, k2, k3 = jax.random.split(key, 3)
    x = jax.random.normal(k1, (B, Cin, H, W), dtype=jnp.float32)
    weight = 0.1 * jax.random.normal(k2, (Cout, Cin, K, K), dtype=jnp.float32)
    bias = 0.1 * jax.random.normal(k3, (Cout,), dtype=jnp.float32)

    out_conv = jax.block_until_ready(
        downsample2d_forward(x, weight, bias, use_conv=True)
    )
    out_pool = jax.block_until_ready(downsample2d_forward(x, use_conv=False))

    # References.
    ref_conv = jax.lax.conv_general_dilated(
        x, weight, window_strides=(2, 2), padding=((1, 1), (1, 1)),
        dimension_numbers=("NCHW", "OIHW", "NCHW"),
    ) + bias[None, :, None, None]
    ref_pool = jnp.mean(x.reshape(B, Cin, H // 2, 2, W // 2, 2), axis=(3, 5))

    assert out_conv.shape == (B, Cout, H // 2, W // 2)
    assert out_pool.shape == (B, Cin, H // 2, W // 2)
    assert jnp.allclose(out_conv, ref_conv, atol=1e-4, rtol=1e-4), float(
        jnp.max(jnp.abs(out_conv - ref_conv))
    )
    assert jnp.allclose(out_pool, ref_pool, atol=1e-5, rtol=1e-5), float(
        jnp.max(jnp.abs(out_pool - ref_pool))
    )

    print("KERNEL_OK")
</pallas_src>

<mosaic_0001>
module attributes {stable_mosaic.version = 11 : i64} {
  func.func @_conv_down_kernel(%arg0: memref<2x64x16xf32, #tpu.memory_space<vmem>>, %arg1: memref<3x64x64xf32, #tpu.memory_space<vmem>>, %arg2: memref<3x16x8xf32, #tpu.memory_space<vmem>>, %arg3: memref<64x1xf32, #tpu.memory_space<vmem>>, %arg4: memref<2x64x8xf32, #tpu.memory_space<vmem>>) attributes {dimension_semantics = [], scalar_prefetch = 0 : i64, scratch_operands = 0 : i64, tpu.core_type = #tpu.core_type<tc>} {
    %c0 = arith.constant 0 : index
    %c0_0 = arith.constant 0 : index
    %0 = vector.load %arg3[%c0, %c0_0] : memref<64x1xf32, #tpu.memory_space<vmem>>, vector<64x1xf32>
    %c0_1 = arith.constant 0 : index
    %c0_2 = arith.constant 0 : index
    %c0_3 = arith.constant 0 : index
    %1 = vector.load %arg0[%c0_1, %c0_2, %c0_3] : memref<2x64x16xf32, #tpu.memory_space<vmem>>, vector<1x64x16xf32>
    %2 = vector.shape_cast %1 : vector<1x64x16xf32> to vector<64x16xf32>
    %cst = arith.constant 0.000000e+00 : f32
    %3 = vector.broadcast %cst : f32 to vector<64x8xf32>
    %c0_4 = arith.constant 0 : index
    %c0_5 = arith.constant 0 : index
    %c0_6 = arith.constant 0 : index
    %4 = vector.load %arg2[%c0_4, %c0_5, %c0_6] : memref<3x16x8xf32, #tpu.memory_space<vmem>>, vector<1x16x8xf32>
    %5 = vector.shape_cast %4 : vector<1x16x8xf32> to vector<16x8xf32>
    %cst_7 = arith.constant dense<0.000000e+00> : vector<64x8xf32>
    %6 = tpu.matmul %2, %5, %cst_7 {dimension_numbers = #tpu.dot_dimension_numbers<[1], [0], [0], [1], [0, 0, 1, 1], [], []>} : vector<64x16xf32>, vector<16x8xf32>, vector<64x8xf32> -> vector<64x8xf32>
    %c0_8 = arith.constant 0 : index
    %c0_9 = arith.constant 0 : index
    %c0_10 = arith.constant 0 : index
    %7 = vector.load %arg1[%c0_8, %c0_9, %c0_10] : memref<3x64x64xf32, #tpu.memory_space<vmem>>, vector<1x64x64xf32>
    %8 = vector.shape_cast %7 : vector<1x64x64xf32> to vector<64x64xf32>
    %cst_11 = arith.constant dense<0.000000e+00> : vector<64x8xf32>
    %9 = tpu.matmul %8, %6, %cst_11 {dimension_numbers = #tpu.dot_dimension_numbers<[1], [0], [0], [1], [0, 0, 1, 1], [], []>} : vector<64x64xf32>, vector<64x8xf32>, vector<64x8xf32> -> vector<64x8xf32>
    %10 = arith.addf %3, %9 : vector<64x8xf32>
    %c1 = arith.constant 1 : index
    %c0_12 = arith.constant 0 : index
    %c0_13 = arith.constant 0 : index
    %11 = vector.load %arg2[%c1, %c0_12, %c0_13] : memref<3x16x8xf32, #tpu.memory_space<vmem>>, vector<1x16x8xf32>
    %12 = vector.shape_cast %11 : vector<1x16x8xf32> to vector<16x8xf32>
    %cst_14 = arith.constant dense<0.000000e+00> : vector<64x8xf32>
    %13 = tpu.matmul %2, %12, %cst_14 {dimension_numbers = #tpu.dot_dimension_numbers<[1], [0], [0], [1], [0, 0, 1, 1], [], []>} : vector<64x16xf32>, vector<16x8xf32>, vector<64x8xf32> -> vector<64x8xf32>
    %c1_15 = arith.constant 1 : index
    %c0_16 = arith.constant 0 : index
    %c0_17 = arith.constant 0 : index
    %14 = vector.load %arg1[%c1_15, %c0_16, %c0_17] : memref<3x64x64xf32, #tpu.memory_space<vmem>>, vector<1x64x64xf32>
    %15 = vector.shape_cast %14 : vector<1x64x64xf32> to vector<64x64xf32>
    %cst_18 = arith.constant dense<0.000000e+00> : vector<64x8xf32>
    %16 = tpu.matmul %15, %13, %cst_18 {dimension_numbers = #tpu.dot_dimension_numbers<[1], [0], [0], [1], [0, 0, 1, 1], [], []>} : vector<64x64xf32>, vector<64x8xf32>, vector<64x8xf32> -> vector<64x8xf32>
    %17 = arith.addf %10, %16 : vector<64x8xf32>
    %c2 = arith.constant 2 : index
    %c0_19 = arith.constant 0 : index
    %c0_20 = arith.constant 0 : index
    %18 = vector.load %arg2[%c2, %c0_19, %c0_20] : memref<3x16x8xf32, #tpu.memory_space<vmem>>, vector<1x16x8xf32>
    %19 = vector.shape_cast %18 : vector<1x16x8xf32> to vector<16x8xf32>
    %cst_21 = arith.constant dense<0.000000e+00> : vector<64x8xf32>
    %20 = tpu.matmul %2, %19, %cst_21 {dimension_numbers = #tpu.dot_dimension_numbers<[1], [0], [0], [1], [0, 0, 1, 1], [], []>} : vector<64x16xf32>, vector<16x8xf32>, vector<64x8xf32> -> vector<64x8xf32>
    %c2_22 = arith.constant 2 : index
    %c0_23 = arith.constant 0 : index
    %c0_24 = arith.constant 0 : index
    %21 = vector.load %arg1[%c2_22, %c0_23, %c0_24] : memref<3x64x64xf32, #tpu.memory_space<vmem>>, vector<1x64x64xf32>
    %22 = vector.shape_cast %21 : vector<1x64x64xf32> to vector<64x64xf32>
    %cst_25 = arith.constant dense<0.000000e+00> : vector<64x8xf32>
    %23 = tpu.matmul %22, %20, %cst_25 {dimension_numbers = #tpu.dot_dimension_numbers<[1], [0], [0], [1], [0, 0, 1, 1], [], []>} : vector<64x64xf32>, vector<64x8xf32>, vector<64x8xf32> -> vector<64x8xf32>
    %24 = arith.addf %17, %23 : vector<64x8xf32>
    %25 = vector.broadcast %0 : vector<64x1xf32> to vector<64x8xf32>
    %26 = arith.addf %24, %25 : vector<64x8xf32>
    %c0_26 = arith.constant 0 : index
    %c0_27 = arith.constant 0 : index
    %c0_28 = arith.constant 0 : index
    %27 = vector.load %arg4[%c0_26, %c0_27, %c0_28] : memref<2x64x8xf32, #tpu.memory_space<vmem>>, vector<1x64x8xf32>
    %28 = vector.shape_cast %27 : vector<1x64x8xf32> to vector<64x8xf32>
    %29 = vector.shape_cast %26 : vector<64x8xf32> to vector<1x64x8xf32>
    tpu.vector_store %arg4[%c0_26, %c0_27, %c0_28], %29 {strides = array<i32>} : memref<2x64x8xf32, #tpu.memory_space<vmem>>, vector<1x64x8xf32>,
    %c1_29 = arith.constant 1 : index
    %c0_30 = arith.constant 0 : index
    %c0_31 = arith.constant 0 : index
    %30 = vector.load %arg0[%c1_29, %c0_30, %c0_31] : memref<2x64x16xf32, #tpu.memory_space<vmem>>, vector<1x64x16xf32>
    %31 = vector.shape_cast %30 : vector<1x64x16xf32> to vector<64x16xf32>
    %cst_32 = arith.constant 0.000000e+00 : f32
    %32 = vector.broadcast %cst_32 : f32 to vector<64x8xf32>
    %c0_33 = arith.constant 0 : index
    %c0_34 = arith.constant 0 : index
    %c0_35 = arith.constant 0 : index
    %33 = vector.load %arg2[%c0_33, %c0_34, %c0_35] : memref<3x16x8xf32, #tpu.memory_space<vmem>>, vector<1x16x8xf32>
    %34 = vector.shape_cast %33 : vector<1x16x8xf32> to vector<16x8xf32>
    %cst_36 = arith.constant dense<0.000000e+00> : vector<64x8xf32>
    %35 = tpu.matmul %31, %34, %cst_36 {dimension_numbers = #tpu.dot_dimension_numbers<[1], [0], [0], [1], [0, 0, 1, 1], [], []>} : vector<64x16xf32>, vector<16x8xf32>, vector<64x8xf32> -> vector<64x8xf32>
    %c0_37 = arith.constant 0 : index
    %c0_38 = arith.constant 0 : index
    %c0_39 = arith.constant 0 : index
    %36 = vector.load %arg1[%c0_37, %c0_38, %c0_39] : memref<3x64x64xf32, #tpu.memory_space<vmem>>, vector<1x64x64xf32>
    %37 = vector.shape_cast %36 : vector<1x64x64xf32> to vector<64x64xf32>
    %cst_40 = arith.constant dense<0.000000e+00> : vector<64x8xf32>
    %38 = tpu.matmul %37, %35, %cst_40 {dimension_numbers = #tpu.dot_dimension_numbers<[1], [0], [0], [1], [0, 0, 1, 1], [], []>} : vector<64x64xf32>, vector<64x8xf32>, vector<64x8xf32> -> vector<64x8xf32>
    %39 = arith.addf %32, %38 : vector<64x8xf32>
    %c1_41 = arith.constant 1 : index
    %c0_42 = arith.constant 0 : index
    %c0_43 = arith.constant 0 : index
    %40 = vector.load %arg2[%c1_41, %c0_42, %c0_43] : memref<3x16x8xf32, #tpu.memory_space<vmem>>, vector<1x16x8xf32>
    %41 = vector.shape_cast %40 : vector<1x16x8xf32> to vector<16x8xf32>
    %cst_44 = arith.constant dense<0.000000e+00> : vector<64x8xf32>
    %42 = tpu.matmul %31, %41, %cst_44 {dimension_numbers = #tpu.dot_dimension_numbers<[1], [0], [0], [1], [0, 0, 1, 1], [], []>} : vector<64x16xf32>, vector<16x8xf32>, vector<64x8xf32> -> vector<64x8xf32>
    %c1_45 = arith.constant 1 : index
    %c0_46 = arith.constant 0 : index
    %c0_47 = arith.constant 0 : index
    %43 = vector.load %arg1[%c1_45, %c0_46, %c0_47] : memref<3x64x64xf32, #tpu.memory_space<vmem>>, vector<1x64x64xf32>
    %44 = vector.shape_cast %43 : vector<1x64x64xf32> to vector<64x64xf32>
    %cst_48 = arith.constant dense<0.000000e+00> : vector<64x8xf32>
    %45 = tpu.matmul %44, %42, %cst_48 {dimension_numbers = #tpu.dot_dimension_numbers<[1], [0], [0], [1], [0, 0, 1, 1], [], []>} : vector<64x64xf32>, vector<64x8xf32>, vector<64x8xf32> -> vector<64x8xf32>
    %46 = arith.addf %39, %45 : vector<64x8xf32>
    %c2_49 = arith.constant 2 : index
    %c0_50 = arith.constant 0 : index
    %c0_51 = arith.constant 0 : index
    %47 = vector.load %arg2[%c2_49, %c0_50, %c0_51] : memref<3x16x8xf32, #tpu.memory_space<vmem>>, vector<1x16x8xf32>
    %48 = vector.shape_cast %47 : vector<1x16x8xf32> to vector<16x8xf32>
    %cst_52 = arith.constant dense<0.000000e+00> : vector<64x8xf32>
    %49 = tpu.matmul %31, %48, %cst_52 {dimension_numbers = #tpu.dot_dimension_numbers<[1], [0], [0], [1], [0, 0, 1, 1], [], []>} : vector<64x16xf32>, vector<16x8xf32>, vector<64x8xf32> -> vector<64x8xf32>
    %c2_53 = arith.constant 2 : index
    %c0_54 = arith.constant 0 : index
    %c0_55 = arith.constant 0 : index
    %50 = vector.load %arg1[%c2_53, %c0_54, %c0_55] : memref<3x64x64xf32, #tpu.memory_space<vmem>>, vector<1x64x64xf32>
    %51 = vector.shape_cast %50 : vector<1x64x64xf32> to vector<64x64xf32>
    %cst_56 = arith.constant dense<0.000000e+00> : vector<64x8xf32>
    %52 = tpu.matmul %51, %49, %cst_56 {dimension_numbers = #tpu.dot_dimension_numbers<[1], [0], [0], [1], [0, 0, 1, 1], [], []>} : vector<64x64xf32>, vector<64x8xf32>, vector<64x8xf32> -> vector<64x8xf32>
    %53 = arith.addf %46, %52 : vector<64x8xf32>
    %54 = vector.broadcast %0 : vector<64x1xf32> to vector<64x8xf32>
    %55 = arith.addf %53, %54 : vector<64x8xf32>
    %c1_57 = arith.constant 1 : index
    %c0_58 = arith.constant 0 : index
    %c0_59 = arith.constant 0 : index
    %56 = vector.load %arg4[%c1_57, %c0_58, %c0_59] : memref<2x64x8xf32, #tpu.memory_space<vmem>>, vector<1x64x8xf32>
    %57 = vector.shape_cast %56 : vector<1x64x8xf32> to vector<64x8xf32>
    %58 = vector.shape_cast %55 : vector<64x8xf32> to vector<1x64x8xf32>
    tpu.vector_store %arg4[%c1_57, %c0_58, %c0_59], %58 {strides = array<i32>} : memref<2x64x8xf32, #tpu.memory_space<vmem>>, vector<1x64x8xf32>,
    return
  }
}

</mosaic_0001>

<llo_original>
// kernel: conv_downsample2d.1
$region0: #{conv_downsample2d.1}
  #allocation0 [shape = 'u32[]', space=smem, size = 0x4, offset = 0x4, fixed_abs, tag = 'smem constant byte address 0x4 - core index']
  #allocation1 [shape = 'u32[144,128]{1,0:T(1,128)}', space=vmem, size = 0x12000, scoped, tag = 'internal scratch']
  %s0 = inlined_call_operand.vmem [shape: f32[2,64,16], index: 0, kind: input, shape index: {}]
  %s1 = inlined_call_operand.vmem [shape: f32[3,64,64], index: 1, kind: input, shape index: {}]
  %s2 = inlined_call_operand.vmem [shape: f32[3,16,8], index: 2, kind: input, shape index: {}]
  %s3 = inlined_call_operand.vmem [shape: f32[64,1], index: 3, kind: input, shape index: {}]
  %s4 = inlined_call_operand.hbm [shape: f32[2,64,8], index: 4, kind: output, shape index: {}]
  %s5 = sld [smem:[#allocation0]]
  $region26: #{conv_downsample2d.1} parent=0
    _
  %s7 = ssub.s32 1, %s5
  %s8 = scalar_select 0, %s7, %s5
  $region1: #{conv_downsample2d.1} parent=0
    #allocation2 [shape = 'u8[65536]{0}', space=vmem, size = 0x10000, scoped, tag = 'output window, operand 0, single buffered']
    #allocation3 [shape = 's32[1]{0}', space=sflag, size = 0x4, scoped, tag = 'scoped memory for conv_downsample2d.1']
    %9 = vsyncpa [#allocation3], 0
    // Predicated region
    $region2: #{conv_downsample2d.1} parent=1 // pred_check
      _
    $region3: #{conv_downsample2d.1} parent=1 // pred_check_branch
      %11 = sbr.rel (0) target = $region5
    $region4: #{conv_downsample2d.1} parent=1 // pred_region
      _
    $region5: #{conv_downsample2d.1} parent=1 // pred_fallthru
      _
    // Predicated region
    $region6: #{conv_downsample2d.1} parent=1 // pred_check
      _
    $region7: #{conv_downsample2d.1} parent=1 // pred_check_branch
      %13 = sbr.rel (0) target = $region9
    $region8: #{conv_downsample2d.1} parent=1 // pred_region
      _
    $region9: #{conv_downsample2d.1} parent=1 // pred_fallthru
      _
    // Predicated region
    $region10: #{conv_downsample2d.1} parent=1 // pred_check
      _
    $region11: #{conv_downsample2d.1} parent=1 // pred_check_branch
      %15 = sbr.rel (0) target = $region13
    $region12: #{conv_downsample2d.1} parent=1 // pred_region
      _
    $region13: #{conv_downsample2d.1} parent=1 // pred_fallthru
      _
    // Predicated region
    $region14: #{conv_downsample2d.1} parent=1 // pred_check
      _
    $region15: #{conv_downsample2d.1} parent=1 // pred_check_branch
      %17 = sbr.rel (0) target = $region17
    $region16: #{conv_downsample2d.1} parent=1 // pred_region
      _
    $region17: #{conv_downsample2d.1} parent=1 // pred_fallthru
      _
    %v18 = vld [vmem:[%s3] sm:$0xff]
    %v19 = vld [vmem:[%s3 + $0x8] sm:$0xff]
    %v20 = vld [vmem:[%s3 + $0x10] sm:$0xff]
    %v21 = vld [vmem:[%s3 + $0x18] sm:$0xff]
    %v22 = vld [vmem:[%s3 + $0x20] sm:$0xff]
    %v23 = vld [vmem:[%s3 + $0x28] sm:$0xff]
    %v24 = vld [vmem:[%s3 + $0x30] sm:$0xff]
    %v25 = vld [vmem:[%s3 + $0x38] sm:$0xff]
    %v26 = vld [vmem:[%s0] sm:$0xff]
    %v27 = vld [vmem:[%s0 + $0x8] sm:$0xff]
    %v28 = vld [vmem:[%s0 + $0x10] sm:$0xff]
    %v29 = vld [vmem:[%s0 + $0x18] sm:$0xff]
    %v30 = vld [vmem:[%s0 + $0x20] sm:$0xff]
    %v31 = vld [vmem:[%s0 + $0x28] sm:$0xff]
    %v32 = vld [vmem:[%s0 + $0x30] sm:$0xff]
    %v33 = vld [vmem:[%s0 + $0x38] sm:$0xff]
    %v34 = vld [vmem:[%s2] sm:$0xff]
    %v35 = vld [vmem:[%s2 + $0x8] sm:$0xff]
    %vm36 = vcmask 130048
    %v38 = vsel %vm36, %v26, 0
    %v41 = vsel %vm36, %v27, 0
    %v44 = vsel %vm36, %v28, 0
    %v47 = vsel %vm36, %v29, 0
    %v50 = vsel %vm36, %v30, 0
    %v53 = vsel %vm36, %v31, 0
    %v56 = vsel %vm36, %v32, 0
    %v59 = vsel %vm36, %v33, 0
    %61 = vmatprep.subr.mxu0 0.0
    %62 = vmatpush1.msra.mxu0 %v34
    %63 = vmatprep.subr.mxu0 0.0
    %64 = vmatpush1.msra.mxu0 %v35
    %65 = vmatprep.subr.mxu0 0.0
    %66 = vmatpush1.msra.mxu0 0.0
    %67 = vmatprep.subr.mxu0 0.0
    %68 = vmatpush1.msra.mxu0 0.0
    %69 = vmatprep.subr.mxu0 0.0
    %70 = vmatpush1.msra.mxu0 0.0
    %71 = vmatprep.subr.mxu0 0.0
    %72 = vmatpush1.msra.mxu0 0.0
    %73 = vmatprep.subr.mxu0 0.0
    %74 = vmatpush1.msra.mxu0 0.0
    %75 = vmatprep.subr.mxu0 0.0
    %76 = vmatpush1.msra.mxu0 0.0
    %77 = vmatprep.subr.mxu0 0.0
    %78 = vmatpush1.msra.mxu0 0.0
    %79 = vmatprep.subr.mxu0 0.0
    %80 = vmatpush1.msra.mxu0 0.0
    %81 = vmatprep.subr.mxu0 0.0
    %82 = vmatpush1.msra.mxu0 0.0
    %83 = vmatprep.subr.mxu0 0.0
    %84 = vmatpush1.msra.mxu0 0.0
    %85 = vmatprep.subr.mxu0 0.0
    %86 = vmatpush1.msra.mxu0 0.0
    %87 = vmatprep.subr.mxu0 0.0
    %88 = vmatpush1.msra.mxu0 0.0
    %89 = vmatprep.subr.mxu0 0.0
    %90 = vmatpush1.msra.mxu0 0.0
    %91 = vmatprep.subr.mxu0 0.0
    %92 = vmatpush1.msra.mxu0 0.0
    %93 = vmatprep.subr.mxu0 0.0
    %94 = vmatpush1.msra.mxu0 0.0
    %95 = vmatprep.subr.mxu0 0.0
    %96 = vmatpush1.msra.mxu0 0.0
    %97 = vmatprep.subr.mxu0 0.0
    %98 = vmatpush1.msra.mxu0 0.0
    %99 = vmatprep.subr.mxu0 0.0
    %100 = vmatpush1.msra.mxu0 0.0
    %101 = vmatprep.subr.mxu0 0.0
    %102 = vmatpush1.msra.mxu0 0.0
    %103 = vmatprep.subr.mxu0 0.0
    %104 = vmatpush1.msra.mxu0 0.0
    %105 = vmatprep.subr.mxu0 0.0
    %106 = vmatpush1.msra.mxu0 0.0
    %107 = vmatprep.subr.mxu0 0.0
    %108 = vmatpush1.msra.mxu0 0.0
    %109 = vmatprep.subr.mxu0 0.0
    %110 = vmatpush1.msra.mxu0 0.0
    %111 = vmatprep.subr.mxu0 0.0
    %112 = vmatpush1.msra.mxu0 0.0
    %113 = vmatprep.subr.mxu0 0.0
    %114 = vmatpush1.msra.mxu0 0.0
    %115 = vmatprep.subr.mxu0 0.0
    %116 = vmatpush1.msra.mxu0 0.0
    %117 = vmatprep.subr.mxu0 0.0
    %118 = vmatpush1.msra.mxu0 0.0
    %119 = vmatprep.subr.mxu0 0.0
    %120 = vmatpush1.msra.mxu0 0.0
    %121 = vmatprep.subr.mxu0 0.0
    %122 = vmatpush1.msra.mxu0 0.0
    %123 = vmatprep.subr.mxu0 0.0
    %124 = vmatpush1.msra.mxu0 0.0
    %125 = vmatprep.mubr.f32.mxu0 0.0
    %126 = vmatmul.mubr.f32.gmra.mrb[0].mxu0 %v38
    %v127 = vpop.f32.mrb[0].mxu0
    %v128 = vadd.f32 0.0, %v127
    %v129 = vpop.f32.mrb[0].mxu0
    %130 = vmatprep.mubr.f32.mxu0 0.0
    %131 = vmatmul.mubr.f32.gmra.mrb[0].mxu0 %v41
    %v132 = vpop.f32.mrb[0].mxu0
    %v133 = vadd.f32 0.0, %v132
    %v134 = vpop.f32.mrb[0].mxu0
    %135 = vmatprep.mubr.f32.mxu0 0.0
    %136 = vmatmul.mubr.f32.gmra.mrb[0].mxu0 %v44
    %v137 = vpop.f32.mrb[0].mxu0
    %v138 = vadd.f32 0.0, %v137
    %v139 = vpop.f32.mrb[0].mxu0
    %140 = vmatprep.mubr.f32.mxu0 0.0
    %141 = vmatmul.mubr.f32.gmra.mrb[0].mxu0 %v47
    %v142 = vpop.f32.mrb[0].mxu0
    %v143 = vadd.f32 0.0, %v142
    %v144 = vpop.f32.mrb[0].mxu0
    %145 = vmatprep.mubr.f32.mxu0 0.0
    %146 = vmatmul.mubr.f32.gmra.mrb[0].mxu0 %v50
    %v147 = vpop.f32.mrb[0].mxu0
    %v148 = vadd.f32 0.0, %v147
    %v149 = vpop.f32.mrb[0].mxu0
    %150 = vmatprep.mubr.f32.mxu0 0.0
    %151 = vmatmul.mubr.f32.gmra.mrb[0].mxu0 %v53
    %v152 = vpop.f32.mrb[0].mxu0
    %v153 = vadd.f32 0.0, %v152
    %v154 = vpop.f32.mrb[0].mxu0
    %155 = vmatprep.mubr.f32.mxu0 0.0
    %156 = vmatmul.mubr.f32.gmra.mrb[0].mxu0 %v56
    %v157 = vpop.f32.mrb[0].mxu0
    %v158 = vadd.f32 0.0, %v157
    %v159 = vpop.f32.mrb[0].mxu0
    %160 = vmatprep.mubr.f32.mxu0 0.0
    %161 = vmatmul.mubr.f32.gmra.mrb[0].mxu0 %v59
    %v162 = vpop.f32.mrb[0].mxu0
    %v163 = vadd.f32 0.0, %v162
    %v164 = vpop.f32.mrb[0].mxu0
    %165 = vdwg.mxu0
    %v166 = vld [vmem:[%s1] sm:$0xff]
    %v167 = vld [vmem:[%s1 + $0x8] sm:$0xff]
    %v168 = vld [vmem:[%s1 + $0x10] sm:$0xff]
    %v169 = vld [vmem:[%s1 + $0x18] sm:$0xff]
    %v170 = vld [vmem:[%s1 + $0x20] sm:$0xff]
    %v171 = vld [vmem:[%s1 + $0x28] sm:$0xff]
    %v172 = vld [vmem:[%s1 + $0x30] sm:$0xff]
    %v173 = vld [vmem:[%s1 + $0x38] sm:$0xff]
    %s174 = scalar_lea.vmem %s2, 16
    %v175 = vld [vmem:[%s174] sm:$0xff]
    %v176 = vld [vmem:[%s174 + $0x8] sm:$0xff]
    %177 = vmatprep.subr.mxu0 0.0
    %178 = vmatpush1.msra.mxu0 %v175
    %179 = vmatprep.subr.mxu0 0.0
    %180 = vmatpush1.msra.mxu0 %v176
    %181 = vmatprep.subr.mxu0 0.0
    %182 = vmatpush1.msra.mxu0 0.0
    %183 = vmatprep.subr.mxu0 0.0
    %184 = vmatpush1.msra.mxu0 0.0
    %185 = vmatprep.subr.mxu0 0.0
    %186 = vmatpush1.msra.mxu0 0.0
    %187 = vmatprep.subr.mxu0 0.0
    %188 = vmatpush1.msra.mxu0 0.0
    %189 = vmatprep.subr.mxu0 0.0
    %190 = vmatpush1.msra.mxu0 0.0
    %191 = vmatprep.subr.mxu0 0.0
    %192 = vmatpush1.msra.mxu0 0.0
    %193 = vmatprep.subr.mxu0 0.0
    %194 = vmatpush1.msra.mxu0 0.0
    %195 = vmatprep.subr.mxu0 0.0
    %196 = vmatpush1.msra.mxu0 0.0
    %197 = vmatprep.subr.mxu0 0.0
    %198 = vmatpush1.msra.mxu0 0.0
    %199 = vmatprep.subr.mxu0 0.0
    %200 = vmatpush1.msra.mxu0 0.0
    %201 = vmatprep.subr.mxu0 0.0
    %202 = vmatpush1.msra.mxu0 0.0
    %203 = vmatprep.subr.mxu0 0.0
    %204 = vmatpush1.msra.mxu0 0.0
    %205 = vmatprep.subr.mxu0 0.0
    %206 = vmatpush1.msra.mxu0 0.0
    %207 = vmatprep.subr.mxu0 0.0
    %208 = vmatpush1.msra.mxu0 0.0
    %209 = vmatprep.subr.mxu0 0.0
    %210 = vmatpush1.msra.mxu0 0.0
    %211 = vmatprep.subr.mxu0 0.0
    %212 = vmatpush1.msra.mxu0 0.0
    %213 = vmatprep.subr.mxu0 0.0
    %214 = vmatpush1.msra.mxu0 0.0
    %215 = vmatprep.subr.mxu0 0.0
    %216 = vmatpush1.msra.mxu0 0.0
    %217 = vmatprep.subr.mxu0 0.0
    %218 = vmatpush1.msra.mxu0 0.0
    %219 = vmatprep.subr.mxu0 0.0
    %220 = vmatpush1.msra.mxu0 0.0
    %221 = vmatprep.subr.mxu0 0.0
    %222 = vmatpush1.msra.mxu0 0.0
    %223 = vmatprep.subr.mxu0 0.0
    %224 = vmatpush1.msra.mxu0 0.0
    %225 = vmatprep.subr.mxu0 0.0
    %226 = vmatpush1.msra.mxu0 0.0
    %227 = vmatprep.subr.mxu0 0.0
    %228 = vmatpush1.msra.mxu0 0.0
    %229 = vmatprep.subr.mxu0 0.0
    %230 = vmatpush1.msra.mxu0 0.0
    %231 = vmatprep.subr.mxu0 0.0
    %232 = vmatpush1.msra.mxu0 0.0
    %233 = vmatprep.subr.mxu0 0.0
    %234 = vmatpush1.msra.mxu0 0.0
    %235 = vmatprep.subr.mxu0 0.0
    %236 = vmatpush1.msra.mxu0 0.0
    %237 = vmatprep.subr.mxu0 0.0
    %238 = vmatpush1.msra.mxu0 0.0
    %239 = vmatprep.subr.mxu0 0.0
    %240 = vmatpush1.msra.mxu0 0.0
    %241 = vmatprep.mubr.f32.mxu0 0.0
    %242 = vmatmul.mubr.f32.gmra.mrb[0].mxu0 %v38
    %v243 = vpop.f32.mrb[0].mxu0
    %v244 = vadd.f32 0.0, %v243
    %v245 = vpop.f32.mrb[0].mxu0
    %246 = vmatprep.mubr.f32.mxu0 0.0
    %247 = vmatmul.mubr.f32.gmra.mrb[0].mxu0 %v41
    %v248 = vpop.f32.mrb[0].mxu0
    %v249 = vadd.f32 0.0, %v248
    %v250 = vpop.f32.mrb[0].mxu0
    %251 = vmatprep.mubr.f32.mxu0 0.0
    %252 = vmatmul.mubr.f32.gmra.mrb[0].mxu0 %v44
    %v253 = vpop.f32.mrb[0].mxu0
    %v254 = vadd.f32 0.0, %v253
    %v255 = vpop.f32.mrb[0].mxu0
    %256 = vmatprep.mubr.f32.mxu0 0.0
    %257 = vmatmul.mubr.f32.gmra.mrb[0].mxu0 %v47
    %v258 = vpop.f32.mrb[0].mxu0
    %v259 = vadd.f32 0.0, %v258
    %v260 = vpop.f32.mrb[0].mxu0
    %261 = vmatprep.mubr.f32.mxu0 0.0
    %262 = vmatmul.mubr.f32.gmra.mrb[0].mxu0 %v50
    %v263 = vpop.f32.mrb[0].mxu0
    %v264 = vadd.f32 0.0, %v263
    %v265 = vpop.f32.mrb[0].mxu0
    %266 = vmatprep.mubr.f32.mxu0 0.0
    %267 = vmatmul.mubr.f32.gmra.mrb[0].mxu0 %v53
    %v268 = vpop.f32.mrb[0].mxu0
    %v269 = vadd.f32 0.0, %v268
    %v270 = vpop.f32.mrb[0].mxu0
    %271 = vmatprep.mubr.f32.mxu0 0.0
    %272 = vmatmul.mubr.f32.gmra.mrb[0].mxu0 %v56
    %v273 = vpop.f32.mrb[0].mxu0
    %v274 = vadd.f32 0.0, %v273
    %v275 = vpop.f32.mrb[0].mxu0
    %276 = vmatprep.mubr.f32.mxu0 0.0
    %277 = vmatmul.mubr.f32.gmra.mrb[0].mxu0 %v59
    %v278 = vpop.f32.mrb[0].mxu0
    %v279 = vadd.f32 0.0, %v278
    %v280 = vpop.f32.mrb[0].mxu0
    %281 = vdwg.mxu0
    %s282 = scalar_lea.vmem %s1, 64
    %v283 = vld [vmem:[%s282] sm:$0xff]
    %v284 = vld [vmem:[%s282 + $0x8] sm:$0xff]
    %v285 = vld [vmem:[%s282 + $0x10] sm:$0xff]
    %v286 = vld [vmem:[%s282 + $0x18] sm:$0xff]
    %v287 = vld [vmem:[%s282 + $0x20] sm:$0xff]
    %v288 = vld [vmem:[%s282 + $0x28] sm:$0xff]
    %v289 = vld [vmem:[%s282 + $0x30] sm:$0xff]
    %v290 = vld [vmem:[%s282 + $0x38] sm:$0xff]
    %vm291 = vcmask 523264
    %v293 = vsel %vm291, %v283, 0
    %v296 = vsel %vm291, %v284, 0
    %v299 = vsel %vm291, %v285, 0
    %v302 = vsel %vm291, %v286, 0
    %v305 = vsel %vm291, %v287, 0
    %v308 = vsel %vm291, %v288, 0
    %v311 = vsel %vm291, %v289, 0
    %v314 = vsel %vm291, %v290, 0
    %316 = vmatprep.subr.mxu0 0.0
    %317 = vmatpush1.msra.mxu0 %v244
    %318 = vmatprep.subr.mxu0 0.0
    %319 = vmatpush1.msra.mxu0 %v249
    %320 = vmatprep.subr.mxu0 0.0
    %321 = vmatpush1.msra.mxu0 %v254
    %322 = vmatprep.subr.mxu0 0.0
    %323 = vmatpush1.msra.mxu0 %v259
    %324 = vmatprep.subr.mxu0 0.0
    %325 = vmatpush1.msra.mxu0 %v264
    %326 = vmatprep.subr.mxu0 0.0
    %327 = vmatpush1.msra.mxu0 %v269
    %328 = vmatprep.subr.mxu0 0.0
    %329 = vmatpush1.msra.mxu0 %v274
    %330 = vmatprep.subr.mxu0 0.0
    %331 = vmatpush1.msra.mxu0 %v279
    %332 = vmatprep.subr.mxu0 0.0
    %333 = vmatpush1.msra.mxu0 0.0
    %334 = vmatprep.subr.mxu0 0.0
    %335 = vmatpush1.msra.mxu0 0.0
    %336 = vmatprep.subr.mxu0 0.0
    %337 = vmatpush1.msra.mxu0 0.0
    %338 = vmatprep.subr.mxu0 0.0
    %339 = vmatpush1.msra.mxu0 0.0
    %340 = vmatprep.subr.mxu0 0.0
    %341 = vmatpush1.msra.mxu0 0.0
    %342 = vmatprep.subr.mxu0 0.0
    %343 = vmatpush1.msra.mxu0 0.0
    %344 = vmatprep.subr.mxu0 0.0
    %345 = vmatpush1.msra.mxu0 0.0
    %346 = vmatprep.subr.mxu0 0.0
    %347 = vmatpush1.msra.mxu0 0.0
    %348 = vmatprep.subr.mxu0 0.0
    %349 = vmatpush1.msra.mxu0 0.0
    %350 = vmatprep.subr.mxu0 0.0
    %351 = vmatpush1.msra.mxu0 0.0
    %352 = vmatprep.subr.mxu0 0.0
    %353 = vmatpush1.msra.mxu0 0.0
    %354 = vmatprep.subr.mxu0 0.0
    %355 = vmatpush1.msra.mxu0 0.0
    %356 = vmatprep.subr.mxu0 0.0
    %357 = vmatpush1.msra.mxu0 0.0
    %358 = vmatprep.subr.mxu0 0.0
    %359 = vmatpush1.msra.mxu0 0.0
    %360 = vmatprep.subr.mxu0 0.0
    %361 = vmatpush1.msra.mxu0 0.0
    %362 = vmatprep.subr.mxu0 0.0
    %363 = vmatpush1.msra.mxu0 0.0
    %364 = vmatprep.subr.mxu0 0.0
    %365 = vmatpush1.msra.mxu0 0.0
    %366 = vmatprep.subr.mxu0 0.0
    %367 = vmatpush1.msra.mxu0 0.0
    %368 = vmatprep.subr.mxu0 0.0
    %369 = vmatpush1.msra.mxu0 0.0
    %370 = vmatprep.subr.mxu0 0.0
    %371 = vmatpush1.msra.mxu0 0.0
    %372 = vmatprep.subr.mxu0 0.0
    %373 = vmatpush1.msra.mxu0 0.0
    %374 = vmatprep.subr.mxu0 0.0
    %375 = vmatpush1.msra.mxu0 0.0
    %376 = vmatprep.subr.mxu0 0.0
    %377 = vmatpush1.msra.mxu0 0.0
    %378 = vmatprep.subr.mxu0 0.0
    %379 = vmatpush1.msra.mxu0 0.0
    %380 = vmatprep.mubr.f32.mxu0 0.0
    %381 = vmatmul.mubr.f32.gmra.mrb[0].mxu0 %v293
    %v382 = vpop.f32.mrb[0].mxu0
    %v383 = vadd.f32 0.0, %v382
    %v384 = vpop.f32.mrb[0].mxu0
    %385 = vmatprep.mubr.f32.mxu0 0.0
    %386 = vmatmul.mubr.f32.gmra.mrb[0].mxu0 %v296
    %v387 = vpop.f32.mrb[0].mxu0
    %v388 = vadd.f32 0.0, %v387
    %v389 = vpop.f32.mrb[0].mxu0
    %390 = vmatprep.mubr.f32.mxu0 0.0
    %391 = vmatmul.mubr.f32.gmra.mrb[0].mxu0 %v299
    %v392 = vpop.f32.mrb[0].mxu0
    %v393 = vadd.f32 0.0, %v392
    %v394 = vpop.f32.mrb[0].mxu0
    %395 = vmatprep.mubr.f32.mxu0 0.0
    %396 = vmatmul.mubr.f32.gmra.mrb[0].mxu0 %v302
    %v397 = vpop.f32.mrb[0].mxu0
    %v398 = vadd.f32 0.0, %v397
    %v399 = vpop.f32.mrb[0].mxu0
    %400 = vmatprep.mubr.f32.mxu0 0.0
    %401 = vmatmul.mubr.f32.gmra.mrb[0].mxu0 %v305
    %v402 = vpop.f32.mrb[0].mxu0
    %v403 = vadd.f32 0.0, %v402
    %v404 = vpop.f32.mrb[0].mxu0
    %405 = vmatprep.mubr.f32.mxu0 0.0
    %406 = vmatmul.mubr.f32.gmra.mrb[0].mxu0 %v308
    %v407 = vpop.f32.mrb[0].mxu0
    %v408 = vadd.f32 0.0, %v407
    %v409 = vpop.f32.mrb[0].mxu0
    %410 = vmatprep.mubr.f32.mxu0 0.0
    %411 = vmatmul.mubr.f32.gmra.mrb[0].mxu0 %v311
    %v412 = vpop.f32.mrb[0].mxu0
    %v413 = vadd.f32 0.0, %v412
    %v414 = vpop.f32.mrb[0].mxu0
    %415 = vmatprep.mubr.f32.mxu0 0.0
    %416 = vmatmul.mubr.f32.gmra.mrb[0].mxu0 %v314
    %v417 = vpop.f32.mrb[0].mxu0
    %v418 = vadd.f32 0.0, %v417
    %v419 = vpop.f32.mrb[0].mxu0
    %420 = vdwg.mxu0
    %v422 = vsel %vm291, %v166, 0
    %v425 = vsel %vm291, %v167, 0
    %v428 = vsel %vm291, %v168, 0
    %v431 = vsel %vm291, %v169, 0
    %v434 = vsel %vm291, %v170, 0
    %v437 = vsel %vm291, %v171, 0
    %v440 = vsel %vm291, %v172, 0
    %v443 = vsel %vm291, %v173, 0
    %445 = vmatprep.subr.mxu0 0.0
    %446 = vmatpush1.msra.mxu0 %v128
    %447 = vmatprep.subr.mxu0 0.0
    %448 = vmatpush1.msra.mxu0 %v133
    %449 = vmatprep.subr.mxu0 0.0
    %450 = vmatpush1.msra.mxu0 %v138
    %451 = vmatprep.subr.mxu0 0.0
    %452 = vmatpush1.msra.mxu0 %v143
    %453 = vmatprep.subr.mxu0 0.0
    %454 = vmatpush1.msra.mxu0 %v148
    %455 = vmatprep.subr.mxu0 0.0
    %456 = vmatpush1.msra.mxu0 %v153
    %457 = vmatprep.subr.mxu0 0.0
    %458 = vmatpush1.msra.mxu0 %v158
    %459 = vmatprep.subr.mxu0 0.0
    %460 = vmatpush1.msra.mxu0 %v163
    %461 = vmatprep.subr.mxu0 0.0
    %462 = vmatpush1.msra.mxu0 0.0
    %463 = vmatprep.subr.mxu0 0.0
    %464 = vmatpush1.msra.mxu0 0.0
    %465 = vmatprep.subr.mxu0 0.0
    %466 = vmatpush1.msra.mxu0 0.0
    %467 = vmatprep.subr.mxu0 0.0
    %468 = vmatpush1.msra.mxu0 0.0
    %469 = vmatprep.subr.mxu0 0.0
    %470 = vmatpush1.msra.mxu0 0.0
    %471 = vmatprep.subr.mxu0 0.0
    %472 = vmatpush1.msra.mxu0 0.0
    %473 = vmatprep.subr.mxu0 0.0
    %474 = vmatpush1.msra.mxu0 0.0
    %475 = vmatprep.subr.mxu0 0.0
    %476 = vmatpush1.msra.mxu0 0.0
    %477 = vmatprep.subr.mxu0 0.0
    %478 = vmatpush1.msra.mxu0 0.0
    %479 = vmatprep.subr.mxu0 0.0
    %480 = vmatpush1.msra.mxu0 0.0
    %481 = vmatprep.subr.mxu0 0.0
    %482 = vmatpush1.msra.mxu0 0.0
    %483 = vmatprep.subr.mxu0 0.0
    %484 = vmatpush1.msra.mxu0 0.0
    %485 = vmatprep.subr.mxu0 0.0
    %486 = vmatpush1.msra.mxu0 0.0
    %487 = vmatprep.subr.mxu0 0.0
    %488 = vmatpush1.msra.mxu0 0.0
    %489 = vmatprep.subr.mxu0 0.0
    %490 = vmatpush1.msra.mxu0 0.0
    %491 = vmatprep.subr.mxu0 0.0
    %492 = vmatpush1.msra.mxu0 0.0
    %493 = vmatprep.subr.mxu0 0.0
    %494 = vmatpush1.msra.mxu0 0.0
    %495 = vmatprep.subr.mxu0 0.0
    %496 = vmatpush1.msra.mxu0 0.0
    %497 = vmatprep.subr.mxu0 0.0
    %498 = vmatpush1.msra.mxu0 0.0
    %499 = vmatprep.subr.mxu0 0.0
    %500 = vmatpush1.msra.mxu0 0.0
    %501 = vmatprep.subr.mxu0 0.0
    %502 = vmatpush1.msra.mxu0 0.0
    %503 = vmatprep.subr.mxu0 0.0
    %504 = vmatpush1.msra.mxu0 0.0
    %505 = vmatprep.subr.mxu0 0.0
    %506 = vmatpush1.msra.mxu0 0.0
    %507 = vmatprep.subr.mxu0 0.0
    %508 = vmatpush1.msra.mxu0 0.0
    %509 = vmatprep.mubr.f32.mxu0 0.0
    %510 = vmatmul.mubr.f32.gmra.mrb[0].mxu0 %v422
    %v511 = vpop.f32.mrb[0].mxu0
    %v512 = vadd.f32 %v383, %v511
    %v513 = vpop.f32.mrb[0].mxu0
    %514 = vmatprep.mubr.f32.mxu0 0.0
    %515 = vmatmul.mubr.f32.gmra.mrb[0].mxu0 %v425
    %v516 = vpop.f32.mrb[0].mxu0
    %v517 = vadd.f32 %v388, %v516
    %v518 = vpop.f32.mrb[0].mxu0
    %519 = vmatprep.mubr.f32.mxu0 0.0
    %520 = vmatmul.mubr.f32.gmra.mrb[0].mxu0 %v428
    %v521 = vpop.f32.mrb[0].mxu0
    %v522 = vadd.f32 %v393, %v521
    %v523 = vpop.f32.mrb[0].mxu0
    %524 = vmatprep.mubr.f32.mxu0 0.0
    %525 = vmatmul.mubr.f32.gmra.mrb[0].mxu0 %v431
    %v526 = vpop.f32.mrb[0].mxu0
    %v527 = vadd.f32 %v398, %v526
    %v528 = vpop.f32.mrb[0].mxu0
    %529 = vmatprep.mubr.f32.mxu0 0.0
    %530 = vmatmul.mubr.f32.gmra.mrb[0].mxu0 %v434
    %v531 = vpop.f32.mrb[0].mxu0
    %v532 = vadd.f32 %v403, %v531
    %v533 = vpop.f32.mrb[0].mxu0
    %534 = vmatprep.mubr.f32.mxu0 0.0
    %535 = vmatmul.mubr.f32.gmra.mrb[0].mxu0 %v437
    %v536 = vpop.f32.mrb[0].mxu0
    %v537 = vadd.f32 %v408, %v536
    %v538 = vpop.f32.mrb[0].mxu0
    %539 = vmatprep.mubr.f32.mxu0 0.0
    %540 = vmatmul.mubr.f32.gmra.mrb[0].mxu0 %v440
    %v541 = vpop.f32.mrb[0].mxu0
    %v542 = vadd.f32 %v413, %v541
    %v543 = vpop.f32.mrb[0].mxu0
    %544 = vmatprep.mubr.f32.mxu0 0.0
    %545 = vmatmul.mubr.f32.gmra.mrb[0].mxu0 %v443
    %v546 = vpop.f32.mrb[0].mxu0
    %v547 = vadd.f32 %v418, %v546
    %v548 = vpop.f32.mrb[0].mxu0
    %549 = vdwg.mxu0
    %s550 = scalar_lea.vmem %s2, 32
    %v551 = vld [vmem:[%s550] sm:$0xff]
    %v552 = vld [vmem:[%s550 + $0x8] sm:$0xff]
    %553 = vmatprep.subr.mxu0 0.0
    %554 = vmatpush1.msra.mxu0 %v551
    %555 = vmatprep.subr.mxu0 0.0
    %556 = vmatpush1.msra.mxu0 %v552
    %557 = vmatprep.subr.mxu0 0.0
    %558 = vmatpush1.msra.mxu0 0.0
    %559 = vmatprep.subr.mxu0 0.0
    %560 = vmatpush1.msra.mxu0 0.0
    %561 = vmatprep.subr.mxu0 0.0
    %562 = vmatpush1.msra.mxu0 0.0
    %563 = vmatprep.subr.mxu0 0.0
    %564 = vmatpush1.msra.mxu0 0.0
    %565 = vmatprep.subr.mxu0 0.0
    %566 = vmatpush1.msra.mxu0 0.0
    %567 = vmatprep.subr.mxu0 0.0
    %568 = vmatpush1.msra.mxu0 0.0
    %569 = vmatprep.subr.mxu0 0.0
    %570 = vmatpush1.msra.mxu0 0.0
    %571 = vmatprep.subr.mxu0 0.0
    %572 = vmatpush1.msra.mxu0 0.0
    %573 = vmatprep.subr.mxu0 0.0
    %574 = vmatpush1.msra.mxu0 0.0
    %575 = vmatprep.subr.mxu0 0.0
    %576 = vmatpush1.msra.mxu0 0.0
    %577 = vmatprep.subr.mxu0 0.0
    %578 = vmatpush1.msra.mxu0 0.0
    %579 = vmatprep.subr.mxu0 0.0
    %580 = vmatpush1.msra.mxu0 0.0
    %581 = vmatprep.subr.mxu0 0.0
    %582 = vmatpush1.msra.mxu0 0.0
    %583 = vmatprep.subr.mxu0 0.0
    %584 = vmatpush1.msra.mxu0 0.0
    %585 = vmatprep.subr.mxu0 0.0
    %586 = vmatpush1.msra.mxu0 0.0
    %587 = vmatprep.subr.mxu0 0.0
    %588 = vmatpush1.msra.mxu0 0.0
    %589 = vmatprep.subr.mxu0 0.0
    %590 = vmatpush1.msra.mxu0 0.0
    %591 = vmatprep.subr.mxu0 0.0
    %592 = vmatpush1.msra.mxu0 0.0
    %593 = vmatprep.subr.mxu0 0.0
    %594 = vmatpush1.msra.mxu0 0.0
    %595 = vmatprep.subr.mxu0 0.0
    %596 = vmatpush1.msra.mxu0 0.0
    %597 = vmatprep.subr.mxu0 0.0
    %598 = vmatpush1.msra.mxu0 0.0
    %599 = vmatprep.subr.mxu0 0.0
    %600 = vmatpush1.msra.mxu0 0.0
    %601 = vmatprep.subr.mxu0 0.0
    %602 = vmatpush1.msra.mxu0 0.0
    %603 = vmatprep.subr.mxu0 0.0
    %604 = vmatpush1.msra.mxu0 0.0
    %605 = vmatprep.subr.mxu0 0.0
    %606 = vmatpush1.msra.mxu0 0.0
    %607 = vmatprep.subr.mxu0 0.0
    %608 = vmatpush1.msra.mxu0 0.0
    %609 = vmatprep.subr.mxu0 0.0
    %610 = vmatpush1.msra.mxu0 0.0
    %611 = vmatprep.subr.mxu0 0.0
    %612 = vmatpush1.msra.mxu0 0.0
    %613 = vmatprep.subr.mxu0 0.0
    %614 = vmatpush1.msra.mxu0 0.0
    %615 = vmatprep.subr.mxu0 0.0
    %616 = vmatpush1.msra.mxu0 0.0
    %617 = vmatprep.mubr.f32.mxu0 0.0
    %618 = vmatmul.mubr.f32.gmra.mrb[0].mxu0 %v38
    %v619 = vpop.f32.mrb[0].mxu0
    %v620 = vadd.f32 0.0, %v619
    %v621 = vpop.f32.mrb[0].mxu0
    %622 = vmatprep.mubr.f32.mxu0 0.0
    %623 = vmatmul.mubr.f32.gmra.mrb[0].mxu0 %v41
    %v624 = vpop.f32.mrb[0].mxu0
    %v625 = vadd.f32 0.0, %v624
    %v626 = vpop.f32.mrb[0].mxu0
    %627 = vmatprep.mubr.f32.mxu0 0.0
    %628 = vmatmul.mubr.f32.gmra.mrb[0].mxu0 %v44
    %v629 = vpop.f32.mrb[0].mxu0
    %v630 = vadd.f32 0.0, %v629
    %v631 = vpop.f32.mrb[0].mxu0
    %632 = vmatprep.mubr.f32.mxu0 0.0
    %633 = vmatmul.mubr.f32.gmra.mrb[0].mxu0 %v47
    %v634 = vpop.f32.mrb[0].mxu0
    %v635 = vadd.f32 0.0, %v634
    %v636 = vpop.f32.mrb[0].mxu0
    %637 = vmatprep.mubr.f32.mxu0 0.0
    %638 = vmatmul.mubr.f32.gmra.mrb[0].mxu0 %v50
    %v639 = vpop.f32.mrb[0].mxu0
    %v640 = vadd.f32 0.0, %v639
    %v641 = vpop.f32.mrb[0].mxu0
    %642 = vmatprep.mubr.f32.mxu0 0.0
    %643 = vmatmul.mubr.f32.gmra.mrb[0].mxu0 %v53
    %v644 = vpop.f32.mrb[0].mxu0
    %v645 = vadd.f32 0.0, %v644
    %v646 = vpop.f32.mrb[0].mxu0
    %647 = vmatprep.mubr.f32.mxu0 0.0
    %648 = vmatmul.mubr.f32.gmra.mrb[0].mxu0 %v56
    %v649 = vpop.f32.mrb[0].mxu0
    %v650 = vadd.f32 0.0, %v649
    %v651 = vpop.f32.mrb[0].mxu0
    %652 = vmatprep.mubr.f32.mxu0 0.0
    %653 = vmatmul.mubr.f32.gmra.mrb[0].mxu0 %v59
    %v654 = vpop.f32.mrb[0].mxu0
    %v655 = vadd.f32 0.0, %v654
    %v656 = vpop.f32.mrb[0].mxu0
    %657 = vdwg.mxu0
    %s658 = scalar_lea.vmem %s1, 128
    %v659 = vld [vmem:[%s658] sm:$0xff]
    %v660 = vld [vmem:[%s658 + $0x8] sm:$0xff]
    %v661 = vld [vmem:[%s658 + $0x10] sm:$0xff]
    %v662 = vld [vmem:[%s658 + $0x18] sm:$0xff]
    %v663 = vld [vmem:[%s658 + $0x20] sm:$0xff]
    %v664 = vld [vmem:[%s658 + $0x28] sm:$0xff]
    %v665 = vld [vmem:[%s658 + $0x30] sm:$0xff]
    %v666 = vld [vmem:[%s658 + $0x38] sm:$0xff]
    %v668 = vsel %vm291, %v659, 0
    %v671 = vsel %vm291, %v660, 0
    %v674 = vsel %vm291, %v661, 0
    %v677 = vsel %vm291, %v662, 0
    %v680 = vsel %vm291, %v663, 0
    %v683 = vsel %vm291, %v664, 0
    %v686 = vsel %vm291, %v665, 0
    %v689 = vsel %vm291, %v666, 0
    %691 = vmatprep.subr.mxu0 0.0
    %692 = vmatpush1.msra.mxu0 %v620
    %693 = vmatprep.subr.mxu0 0.0
    %694 = vmatpush1.msra.mxu0 %v625
    %695 = vmatprep.subr.mxu0 0.0
    %696 = vmatpush1.msra.mxu0 %v630
    %697 = vmatprep.subr.mxu0 0.0
    %698 = vmatpush1.msra.mxu0 %v635
    %699 = vmatprep.subr.mxu0 0.0
    %700 = vmatpush1.msra.mxu0 %v640
    %701 = vmatprep.subr.mxu0 0.0
    %702 = vmatpush1.msra.mxu0 %v645
    %703 = vmatprep.subr.mxu0 0.0
    %704 = vmatpush1.msra.mxu0 %v650
    %705 = vmatprep.subr.mxu0 0.0
    %706 = vmatpush1.msra.mxu0 %v655
    %707 = vmatprep.subr.mxu0 0.0
    %708 = vmatpush1.msra.mxu0 0.0
    %709 = vmatprep.subr.mxu0 0.0
    %710 = vmatpush1.msra.mxu0 0.0
    %711 = vmatprep.subr.mxu0 0.0
    %712 = vmatpush1.msra.mxu0 0.0
    %713 = vmatprep.subr.mxu0 0.0
    %714 = vmatpush1.msra.mxu0 0.0
    %715 = vmatprep.subr.mxu0 0.0
    %716 = vmatpush1.msra.mxu0 0.0
    %717 = vmatprep.subr.mxu0 0.0
    %718 = vmatpush1.msra.mxu0 0.0
    %719 = vmatprep.subr.mxu0 0.0
    %720 = vmatpush1.msra.mxu0 0.0
    %721 = vmatprep.subr.mxu0 0.0
    %722 = vmatpush1.msra.mxu0 0.0
    %723 = vmatprep.subr.mxu0 0.0
    %724 = vmatpush1.msra.mxu0 0.0
    %725 = vmatprep.subr.mxu0 0.0
    %726 = vmatpush1.msra.mxu0 0.0
    %727 = vmatprep.subr.mxu0 0.0
    %728 = vmatpush1.msra.mxu0 0.0
    %729 = vmatprep.subr.mxu0 0.0
    %730 = vmatpush1.msra.mxu0 0.0
    %731 = vmatprep.subr.mxu0 0.0
    %732 = vmatpush1.msra.mxu0 0.0
    %733 = vmatprep.subr.mxu0 0.0
    %734 = vmatpush1.msra.mxu0 0.0
    %735 = vmatprep.subr.mxu0 0.0
    %736 = vmatpush1.msra.mxu0 0.0
    %737 = vmatprep.subr.mxu0 0.0
    %738 = vmatpush1.msra.mxu0 0.0
    %739 = vmatprep.subr.mxu0 0.0
    %740 = vmatpush1.msra.mxu0 0.0
    %741 = vmatprep.subr.mxu0 0.0
    %742 = vmatpush1.msra.mxu0 0.0
    %743 = vmatprep.subr.mxu0 0.0
    %744 = vmatpush1.msra.mxu0 0.0
    %745 = vmatprep.subr.mxu0 0.0
    %746 = vmatpush1.msra.mxu0 0.0
    %747 = vmatprep.subr.mxu0 0.0
    %748 = vmatpush1.msra.mxu0 0.0
    %749 = vmatprep.subr.mxu0 0.0
    %750 = vmatpush1.msra.mxu0 0.0
    %751 = vmatprep.subr.mxu0 0.0
    %752 = vmatpush1.msra.mxu0 0.0
    %753 = vmatprep.subr.mxu0 0.0
    %754 = vmatpush1.msra.mxu0 0.0
    %755 = vmatprep.mubr.f32.mxu0 0.0
    %756 = vmatmul.mubr.f32.gmra.mrb[0].mxu0 %v668
    %v757 = vpop.f32.mrb[0].mxu0
    %v758 = vadd.f32 0.0, %v757
    %v759 = vpop.f32.mrb[0].mxu0
    %760 = vmatprep.mubr.f32.mxu0 0.0
    %761 = vmatmul.mubr.f32.gmra.mrb[0].mxu0 %v671
    %v762 = vpop.f32.mrb[0].mxu0
    %v763 = vadd.f32 0.0, %v762
    %v764 = vpop.f32.mrb[0].mxu0
    %765 = vmatprep.mubr.f32.mxu0 0.0
    %766 = vmatmul.mubr.f32.gmra.mrb[0].mxu0 %v674
    %v767 = vpop.f32.mrb[0].mxu0
    %v768 = vadd.f32 0.0, %v767
    %v769 = vpop.f32.mrb[0].mxu0
    %770 = vmatprep.mubr.f32.mxu0 0.0
    %771 = vmatmul.mubr.f32.gmra.mrb[0].mxu0 %v677
    %v772 = vpop.f32.mrb[0].mxu0
    %v773 = vadd.f32 0.0, %v772
    %v774 = vpop.f32.mrb[0].mxu0
    %775 = vmatprep.mubr.f32.mxu0 0.0
    %776 = vmatmul.mubr.f32.gmra.mrb[0].mxu0 %v680
    %v777 = vpop.f32.mrb[0].mxu0
    %v778 = vadd.f32 0.0, %v777
    %v779 = vpop.f32.mrb[0].mxu0
    %780 = vmatprep.mubr.f32.mxu0 0.0
    %781 = vmatmul.mubr.f32.gmra.mrb[0].mxu0 %v683
    %v782 = vpop.f32.mrb[0].mxu0
    %v783 = vadd.f32 0.0, %v782
    %v784 = vpop.f32.mrb[0].mxu0
    %785 = vmatprep.mubr.f32.mxu0 0.0
    %786 = vmatmul.mubr.f32.gmra.mrb[0].mxu0 %v686
    %v787 = vpop.f32.mrb[0].mxu0
    %v788 = vadd.f32 0.0, %v787
    %v789 = vpop.f32.mrb[0].mxu0
    %790 = vmatprep.mubr.f32.mxu0 0.0
    %791 = vmatmul.mubr.f32.gmra.mrb[0].mxu0 %v689
    %v792 = vpop.f32.mrb[0].mxu0
    %v793 = vadd.f32 0.0, %v792
    %v794 = vpop.f32.mrb[0].mxu0
    %795 = vdwg.mxu0
    %v796 = vadd.f32 %v512, %v758
    %v797 = vadd.f32 %v517, %v763
    %v798 = vadd.f32 %v522, %v768
    %v799 = vadd.f32 %v527, %v773
    %v800 = vadd.f32 %v532, %v778
    %v801 = vadd.f32 %v537, %v783
    %v802 = vadd.f32 %v542, %v788
    %v803 = vadd.f32 %v547, %v793
    %805 = vset.pattern.permute.xlu0 0
    %806 = vperm.xlu0 %805, %v18
    %v807 = vpop.permute.xlu0 %806
    %810 = vset.pattern.permute.xlu0 0
    %811 = vperm.xlu0 %810, %v19
    %v812 = vpop.permute.xlu0 %811
    %815 = vset.pattern.permute.xlu0 0
    %816 = vperm.xlu0 %815, %v20
    %v817 = vpop.permute.xlu0 %816
    %820 = vset.pattern.permute.xlu0 0
    %821 = vperm.xlu0 %820, %v21
    %v822 = vpop.permute.xlu0 %821
    %825 = vset.pattern.permute.xlu0 0
    %826 = vperm.xlu0 %825, %v22
    %v827 = vpop.permute.xlu0 %826
    %830 = vset.pattern.permute.xlu0 0
    %831 = vperm.xlu0 %830, %v23
    %v832 = vpop.permute.xlu0 %831
    %835 = vset.pattern.permute.xlu0 0
    %836 = vperm.xlu0 %835, %v24
    %v837 = vpop.permute.xlu0 %836
    %840 = vset.pattern.permute.xlu0 0
    %841 = vperm.xlu0 %840, %v25
    %v842 = vpop.permute.xlu0 %841
    %v844 = vadd.f32 %v796, %v807
    %v845 = vadd.f32 %v797, %v812
    %v846 = vadd.f32 %v798, %v817
    %v847 = vadd.f32 %v799, %v822
    %v848 = vadd.f32 %v800, %v827
    %v849 = vadd.f32 %v801, %v832
    %v850 = vadd.f32 %v802, %v837
    %v851 = vadd.f32 %v803, %v842
    %vm852 = vcmask 64512
    %853 = vst.msk [vmem:[#allocation2] sm:$0xff] %vm852, %v844
    %854 = vst.msk [vmem:[#allocation2 + $0x8] sm:$0xff] %vm852, %v845
    %855 = vst.msk [vmem:[#allocation2 + $0x10] sm:$0xff] %vm852, %v846
    %856 = vst.msk [vmem:[#allocation2 + $0x18] sm:$0xff] %vm852, %v847
    %857 = vst.msk [vmem:[#allocation2 + $0x20] sm:$0xff] %vm852, %v848
    %858 = vst.msk [vmem:[#allocation2 + $0x28] sm:$0xff] %vm852, %v849
    %859 = vst.msk [vmem:[#allocation2 + $0x30] sm:$0xff] %vm852, %v850
    %860 = vst.msk [vmem:[#allocation2 + $0x38] sm:$0xff] %vm852, %v851
    %s861 = scalar_lea.vmem %s0, 64
    %v862 = vld [vmem:[%s861] sm:$0xff]
    %v863 = vld [vmem:[%s861 + $0x8] sm:$0xff]
    %v864 = vld [vmem:[%s861 + $0x10] sm:$0xff]
    %v865 = vld [vmem:[%s861 + $0x18] sm:$0xff]
    %v866 = vld [vmem:[%s861 + $0x20] sm:$0xff]
    %v867 = vld [vmem:[%s861 + $0x28] sm:$0xff]
    %v868 = vld [vmem:[%s861 + $0x30] sm:$0xff]
    %v869 = vld [vmem:[%s861 + $0x38] sm:$0xff]
    %v870 = vld [vmem:[%s2] sm:$0xff]
    %v871 = vld [vmem:[%s2 + $0x8] sm:$0xff]
    %v873 = vsel %vm36, %v862, 0
    %v876 = vsel %vm36, %v863, 0
    %v879 = vsel %vm36, %v864, 0
    %v882 = vsel %vm36, %v865, 0
    %v885 = vsel %vm36, %v866, 0
    %v888 = vsel %vm36, %v867, 0
    %v891 = vsel %vm36, %v868, 0
    %v894 = vsel %vm36, %v869, 0
    %896 = vmatprep.subr.mxu0 0.0
    %897 = vmatpush1.msra.mxu0 %v870
    %898 = vmatprep.subr.mxu0 0.0
    %899 = vmatpush1.msra.mxu0 %v871
    %900 = vmatprep.subr.mxu0 0.0
    %901 = vmatpush1.msra.mxu0 0.0
    %902 = vmatprep.subr.mxu0 0.0
    %903 = vmatpush1.msra.mxu0 0.0
    %904 = vmatprep.subr.mxu0 0.0
    %905 = vmatpush1.msra.mxu0 0.0
    %906 = vmatprep.subr.mxu0 0.0
    %907 = vmatpush1.msra.mxu0 0.0
    %908 = vmatprep.subr.mxu0 0.0
    %909 = vmatpush1.msra.mxu0 0.0
    %910 = vmatprep.subr.mxu0 0.0
    %911 = vmatpush1.msra.mxu0 0.0
    %912 = vmatprep.subr.mxu0 0.0
    %913 = vmatpush1.msra.mxu0 0.0
    %914 = vmatprep.subr.mxu0 0.0
    %915 = vmatpush1.msra.mxu0 0.0
    %916 = vmatprep.subr.mxu0 0.0
    %917 = vmatpush1.msra.mxu0 0.0
    %918 = vmatprep.subr.mxu0 0.0
    %919 = vmatpush1.msra.mxu0 0.0
    %920 = vmatprep.subr.mxu0 0.0
    %921 = vmatpush1.msra.mxu0 0.0
    %922 = vmatprep.subr.mxu0 0.0
    %923 = vmatpush1.msra.mxu0 0.0
    %924 = vmatprep.subr.mxu0 0.0
    %925 = vmatpush1.msra.mxu0 0.0
    %926 = vmatprep.subr.mxu0 0.0
    %927 = vmatpush1.msra.mxu0 0.0
    %928 = vmatprep.subr.mxu0 0.0
    %929 = vmatpush1.msra.mxu0 0.0
    %930 = vmatprep.subr.mxu0 0.0
    %931 = vmatpush1.msra.mxu0 0.0
    %932 = vmatprep.subr.mxu0 0.0
    %933 = vmatpush1.msra.mxu0 0.0
    %934 = vmatprep.subr.mxu0 0.0
    %935 = vmatpush1.msra.mxu0 0.0
    %936 = vmatprep.subr.mxu0 0.0
    %937 = vmatpush1.msra.mxu0 0.0
    %938 = vmatprep.subr.mxu0 0.0
    %939 = vmatpush1.msra.mxu0 0.0
    %940 = vmatprep.subr.mxu0 0.0
    %941 = vmatpush1.msra.mxu0 0.0
    %942 = vmatprep.subr.mxu0 0.0
    %943 = vmatpush1.msra.mxu0 0.0
    %944 = vmatprep.subr.mxu0 0.0
    %945 = vmatpush1.msra.mxu0 0.0
    %946 = vmatprep.subr.mxu0 0.0
    %947 = vmatpush1.msra.mxu0 0.0
    %948 = vmatprep.subr.mxu0 0.0
    %949 = vmatpush1.msra.mxu0 0.0
    %950 = vmatprep.subr.mxu0 0.0
    %951 = vmatpush1.msra.mxu0 0.0
    %952 = vmatprep.subr.mxu0 0.0
    %953 = vmatpush1.msra.mxu0 0.0
    %954 = vmatprep.subr.mxu0 0.0
    %955 = vmatpush1.msra.mxu0 0.0
    %956 = vmatprep.subr.mxu0 0.0
    %957 = vmatpush1.msra.mxu0 0.0
    %958 = vmatprep.subr.mxu0 0.0
    %959 = vmatpush1.msra.mxu0 0.0
    %960 = vmatprep.mubr.f32.mxu0 0.0
    %961 = vmatmul.mubr.f32.gmra.mrb[0].mxu0 %v873
    %v962 = vpop.f32.mrb[0].mxu0
    %v963 = vadd.f32 0.0, %v962
    %v964 = vpop.f32.mrb[0].mxu0
    %965 = vmatprep.mubr.f32.mxu0 0.0
    %966 = vmatmul.mubr.f32.gmra.mrb[0].mxu0 %v876
    %v967 = vpop.f32.mrb[0].mxu0
    %v968 = vadd.f32 0.0, %v967
    %v969 = vpop.f32.mrb[0].mxu0
    %970 = vmatprep.mubr.f32.mxu0 0.0
    %971 = vmatmul.mubr.f32.gmra.mrb[0].mxu0 %v879
    %v972 = vpop.f32.mrb[0].mxu0
    %v973 = vadd.f32 0.0, %v972
    %v974 = vpop.f32.mrb[0].mxu0
    %975 = vmatprep.mubr.f32.mxu0 0.0
    %976 = vmatmul.mubr.f32.gmra.mrb[0].mxu0 %v882
    %v977 = vpop.f32.mrb[0].mxu0
    %v978 = vadd.f32 0.0, %v977
    %v979 = vpop.f32.mrb[0].mxu0
    %980 = vmatprep.mubr.f32.mxu0 0.0
    %981 = vmatmul.mubr.f32.gmra.mrb[0].mxu0 %v885
    %v982 = vpop.f32.mrb[0].mxu0
    %v983 = vadd.f32 0.0, %v982
    %v984 = vpop.f32.mrb[0].mxu0
    %985 = vmatprep.mubr.f32.mxu0 0.0
    %986 = vmatmul.mubr.f32.gmra.mrb[0].mxu0 %v888
    %v987 = vpop.f32.mrb[0].mxu0
    %v988 = vadd.f32 0.0, %v987
    %v989 = vpop.f32.mrb[0].mxu0
    %990 = vmatprep.mubr.f32.mxu0 0.0
    %991 = vmatmul.mubr.f32.gmra.mrb[0].mxu0 %v891
    %v992 = vpop.f32.mrb[0].mxu0
    %v993 = vadd.f32 0.0, %v992
    %v994 = vpop.f32.mrb[0].mxu0
    %995 = vmatprep.mubr.f32.mxu0 0.0
    %996 = vmatmul.mubr.f32.gmra.mrb[0].mxu0 %v894
    %v997 = vpop.f32.mrb[0].mxu0
    %v998 = vadd.f32 0.0, %v997
    %v999 = vpop.f32.mrb[0].mxu0
    %1000 = vdwg.mxu0
    %v1001 = vld [vmem:[%s1] sm:$0xff]
    %v1002 = vld [vmem:[%s1 + $0x8] sm:$0xff]
    %v1003 = vld [vmem:[%s1 + $0x10] sm:$0xff]
    %v1004 = vld [vmem:[%s1 + $0x18] sm:$0xff]
    %v1005 = vld [vmem:[%s1 + $0x20] sm:$0xff]
    %v1006 = vld [vmem:[%s1 + $0x28] sm:$0xff]
    %v1007 = vld [vmem:[%s1 + $0x30] sm:$0xff]
    %v1008 = vld [vmem:[%s1 + $0x38] sm:$0xff]
    %v1009 = vld [vmem:[%s174] sm:$0xff]
    %v1010 = vld [vmem:[%s174 + $0x8] sm:$0xff]
    %1011 = vmatprep.subr.mxu0 0.0
    %1012 = vmatpush1.msra.mxu0 %v1009
    %1013 = vmatprep.subr.mxu0 0.0
    %1014 = vmatpush1.msra.mxu0 %v1010
    %1015 = vmatprep.subr.mxu0 0.0
    %1016 = vmatpush1.msra.mxu0 0.0
    %1017 = vmatprep.subr.mxu0 0.0
    %1018 = vmatpush1.msra.mxu0 0.0
    %1019 = vmatprep.subr.mxu0 0.0
    %1020 = vmatpush1.msra.mxu0 0.0
    %1021 = vmatprep.subr.mxu0 0.0
    %1022 = vmatpush1.msra.mxu0 0.0
    %1023 = vmatprep.subr.mxu0 0.0
    %1024 = vmatpush1.msra.mxu0 0.0
    %1025 = vmatprep.subr.mxu0 0.0
    %1026 = vmatpush1.msra.mxu0 0.0
    %1027 = vmatprep.subr.mxu0 0.0
    %1028 = vmatpush1.msra.mxu0 0.0
    %1029 = vmatprep.subr.mxu0 0.0
    %1030 = vmatpush1.msra.mxu0 0.0
    %1031 = vmatprep.subr.mxu0 0.0
    %1032 = vmatpush1.msra.mxu0 0.0
    %1033 = vmatprep.subr.mxu0 0.0
    %1034 = vmatpush1.msra.mxu0 0.0
    %1035 = vmatprep.subr.mxu0 0.0
    %1036 = vmatpush1.msra.mxu0 0.0
    %1037 = vmatprep.subr.mxu0 0.0
    %1038 = vmatpush1.msra.mxu0 0.0
    %1039 = vmatprep.subr.mxu0 0.0
    %1040 = vmatpush1.msra.mxu0 0.0
    %1041 = vmatprep.subr.mxu0 0.0
    %1042 = vmatpush1.msra.mxu0 0.0
    %1043 = vmatprep.subr.mxu0 0.0
    %1044 = vmatpush1.msra.mxu0 0.0
    %1045 = vmatprep.subr.mxu0 0.0
    %1046 = vmatpush1.msra.mxu0 0.0
    %1047 = vmatprep.subr.mxu0 0.0
    %1048 = vmatpush1.msra.mxu0 0.0
    %1049 = vmatprep.subr.mxu0 0.0
    %1050 = vmatpush1.msra.mxu0 0.0
    %1051 = vmatprep.subr.mxu0 0.0
    %1052 = vmatpush1.msra.mxu0 0.0
    %1053 = vmatprep.subr.mxu0 0.0
    %1054 = vmatpush1.msra.mxu0 0.0
    %1055 = vmatprep.subr.mxu0 0.0
    %1056 = vmatpush1.msra.mxu0 0.0
    %1057 = vmatprep.subr.mxu0 0.0
    %1058 = vmatpush1.msra.mxu0 0.0
    %1059 = vmatprep.subr.mxu0 0.0
    %1060 = vmatpush1.msra.mxu0 0.0
    %1061 = vmatprep.subr.mxu0 0.0
    %1062 = vmatpush1.msra.mxu0 0.0
    %1063 = vmatprep.subr.mxu0 0.0
    %1064 = vmatpush1.msra.mxu0 0.0
    %1065 = vmatprep.subr.mxu0 0.0
    %1066 = vmatpush1.msra.mxu0 0.0
    %1067 = vmatprep.subr.mxu0 0.0
    %1068 = vmatpush1.msra.mxu0 0.0
    %1069 = vmatprep.subr.mxu0 0.0
    %1070 = vmatpush1.msra.mxu0 0.0
    %1071 = vmatprep.subr.mxu0 0.0
    %1072 = vmatpush1.msra.mxu0 0.0
    %1073 = vmatprep.subr.mxu0 0.0
    %1074 = vmatpush1.msra.mxu0 0.0
    %1075 = vmatprep.mubr.f32.mxu0 0.0
    %1076 = vmatmul.mubr.f32.gmra.mrb[0].mxu0 %v873
    %v1077 = vpop.f32.mrb[0].mxu0
    %v1078 = vadd.f32 0.0, %v1077
    %v1079 = vpop.f32.mrb[0].mxu0
    %1080 = vmatprep.mubr.f32.mxu0 0.0
    %1081 = vmatmul.mubr.f32.gmra.mrb[0].mxu0 %v876
    %v1082 = vpop.f32.mrb[0].mxu0
    %v1083 = vadd.f32 0.0, %v1082
    %v1084 = vpop.f32.mrb[0].mxu0
    %1085 = vmatprep.mubr.f32.mxu0 0.0
    %1086 = vmatmul.mubr.f32.gmra.mrb[0].mxu0 %v879
    %v1087 = vpop.f32.mrb[0].mxu0
    %v1088 = vadd.f32 0.0, %v1087
    %v1089 = vpop.f32.mrb[0].mxu0
    %1090 = vmatprep.mubr.f32.mxu0 0.0
    %1091 = vmatmul.mubr.f32.gmra.mrb[0].mxu0 %v882
    %v1092 = vpop.f32.mrb[0].mxu0
    %v1093 = vadd.f32 0.0, %v1092
    %v1094 = vpop.f32.mrb[0].mxu0
    %1095 = vmatprep.mubr.f32.mxu0 0.0
    %1096 = vmatmul.mubr.f32.gmra.mrb[0].mxu0 %v885
    %v1097 = vpop.f32.mrb[0].mxu0
    %v1098 = vadd.f32 0.0, %v1097
    %v1099 = vpop.f32.mrb[0].mxu0
    %1100 = vmatprep.mubr.f32.mxu0 0.0
    %1101 = vmatmul.mubr.f32.gmra.mrb[0].mxu0 %v888
    %v1102 = vpop.f32.mrb[0].mxu0
    %v1103 = vadd.f32 0.0, %v1102
    %v1104 = vpop.f32.mrb[0].mxu0
    %1105 = vmatprep.mubr.f32.mxu0 0.0
    %1106 = vmatmul.mubr.f32.gmra.mrb[0].mxu0 %v891
    %v1107 = vpop.f32.mrb[0].mxu0
    %v1108 = vadd.f32 0.0, %v1107
    %v1109 = vpop.f32.mrb[0].mxu0
    %1110 = vmatprep.mubr.f32.mxu0 0.0
    %1111 = vmatmul.mubr.f32.gmra.mrb[0].mxu0 %v894
    %v1112 = vpop.f32.mrb[0].mxu0
    %v1113 = vadd.f32 0.0, %v1112
    %v1114 = vpop.f32.mrb[0].mxu0
    %1115 = vdwg.mxu0
    %v1116 = vld [vmem:[%s282] sm:$0xff]
    %v1117 = vld [vmem:[%s282 + $0x8] sm:$0xff]
    %v1118 = vld [vmem:[%s282 + $0x10] sm:$0xff]
    %v1119 = vld [vmem:[%s282 + $0x18] sm:$0xff]
    %v1120 = vld [vmem:[%s282 + $0x20] sm:$0xff]
    %v1121 = vld [vmem:[%s282 + $0x28] sm:$0xff]
    %v1122 = vld [vmem:[%s282 + $0x30] sm:$0xff]
    %v1123 = vld [vmem:[%s282 + $0x38] sm:$0xff]
    %v1125 = vsel %vm291, %v1116, 0
    %v1128 = vsel %vm291, %v1117, 0
    %v1131 = vsel %vm291, %v1118, 0
    %v1134 = vsel %vm291, %v1119, 0
    %v1137 = vsel %vm291, %v1120, 0
    %v1140 = vsel %vm291, %v1121, 0
    %v1143 = vsel %vm291, %v1122, 0
    %v1146 = vsel %vm291, %v1123, 0
    %1148 = vmatprep.subr.mxu0 0.0
    %1149 = vmatpush1.msra.mxu0 %v1078
    %1150 = vmatprep.subr.mxu0 0.0
    %1151 = vmatpush1.msra.mxu0 %v1083
    %1152 = vmatprep.subr.mxu0 0.0
    %1153 = vmatpush1.msra.mxu0 %v1088
    %1154 = vmatprep.subr.mxu0 0.0
    %1155 = vmatpush1.msra.mxu0 %v1093
    %1156 = vmatprep.subr.mxu0 0.0
    %1157 = vmatpush1.msra.mxu0 %v1098
    %1158 = vmatprep.subr.mxu0 0.0
    %1159 = vmatpush1.msra.mxu0 %v1103
    %1160 = vmatprep.subr.mxu0 0.0
    %1161 = vmatpush1.msra.mxu0 %v1108
    %1162 = vmatprep.subr.mxu0 0.0
    %1163 = vmatpush1.msra.mxu0 %v1113
    %1164 = vmatprep.subr.mxu0 0.0
    %1165 = vmatpush1.msra.mxu0 0.0
    %1166 = vmatprep.subr.mxu0 0.0
    %1167 = vmatpush1.msra.mxu0 0.0
    %1168 = vmatprep.subr.mxu0 0.0
    %1169 = vmatpush1.msra.mxu0 0.0
    %1170 = vmatprep.subr.mxu0 0.0
    %1171 = vmatpush1.msra.mxu0 0.0
    %1172 = vmatprep.subr.mxu0 0.0
    %1173 = vmatpush1.msra.mxu0 0.0
    %1174 = vmatprep.subr.mxu0 0.0
    %1175 = vmatpush1.msra.mxu0 0.0
    %1176 = vmatprep.subr.mxu0 0.0
    %1177 = vmatpush1.msra.mxu0 0.0
    %1178 = vmatprep.subr.mxu0 0.0
    %1179 = vmatpush1.msra.mxu0 0.0
    %1180 = vmatprep.subr.mxu0 0.0
    %1181 = vmatpush1.msra.mxu0 0.0
    %1182 = vmatprep.subr.mxu0 0.0
    %1183 = vmatpush1.msra.mxu0 0.0
    %1184 = vmatprep.subr.mxu0 0.0
    %1185 = vmatpush1.msra.mxu0 0.0
    %1186 = vmatprep.subr.mxu0 0.0
    %1187 = vmatpush1.msra.mxu0 0.0
    %1188 = vmatprep.subr.mxu0 0.0
    %1189 = vmatpush1.msra.mxu0 0.0
    %1190 = vmatprep.subr.mxu0 0.0
    %1191 = vmatpush1.msra.mxu0 0.0
    %1192 = vmatprep.subr.mxu0 0.0
    %1193 = vmatpush1.msra.mxu0 0.0
    %1194 = vmatprep.subr.mxu0 0.0
    %1195 = vmatpush1.msra.mxu0 0.0
    %1196 = vmatprep.subr.mxu0 0.0
    %1197 = vmatpush1.msra.mxu0 0.0
    %1198 = vmatprep.subr.mxu0 0.0
    %1199 = vmatpush1.msra.mxu0 0.0
    %1200 = vmatprep.subr.mxu0 0.0
    %1201 = vmatpush1.msra.mxu0 0.0
    %1202 = vmatprep.subr.mxu0 0.0
    %1203 = vmatpush1.msra.mxu0 0.0
    %1204 = vmatprep.subr.mxu0 0.0
    %1205 = vmatpush1.msra.mxu0 0.0
    %1206 = vmatprep.subr.mxu0 0.0
    %1207 = vmatpush1.msra.mxu0 0.0
    %1208 = vmatprep.subr.mxu0 0.0
    %1209 = vmatpush1.msra.mxu0 0.0
    %1210 = vmatprep.subr.mxu0 0.0
    %1211 = vmatpush1.msra.mxu0 0.0
    %1212 = vmatprep.mubr.f32.mxu0 0.0
    %1213 = vmatmul.mubr.f32.gmra.mrb[0].mxu0 %v1125
    %v1214 = vpop.f32.mrb[0].mxu0
    %v1215 = vadd.f32 0.0, %v1214
    %v1216 = vpop.f32.mrb[0].mxu0
    %1217 = vmatprep.mubr.f32.mxu0 0.0
    %1218 = vmatmul.mubr.f32.gmra.mrb[0].mxu0 %v1128
    %v1219 = vpop.f32.mrb[0].mxu0
    %v1220 = vadd.f32 0.0, %v1219
    %v1221 = vpop.f32.mrb[0].mxu0
    %1222 = vmatprep.mubr.f32.mxu0 0.0
    %1223 = vmatmul.mubr.f32.gmra.mrb[0].mxu0 %v1131
    %v1224 = vpop.f32.mrb[0].mxu0
    %v1225 = vadd.f32 0.0, %v1224
    %v1226 = vpop.f32.mrb[0].mxu0
    %1227 = vmatprep.mubr.f32.mxu0 0.0
    %1228 = vmatmul.mubr.f32.gmra.mrb[0].mxu0 %v1134
    %v1229 = vpop.f32.mrb[0].mxu0
    %v1230 = vadd.f32 0.0, %v1229
    %v1231 = vpop.f32.mrb[0].mxu0
    %1232 = vmatprep.mubr.f32.mxu0 0.0
    %1233 = vmatmul.mubr.f32.gmra.mrb[0].mxu0 %v1137
    %v1234 = vpop.f32.mrb[0].mxu0
    %v1235 = vadd.f32 0.0, %v1234
    %v1236 = vpop.f32.mrb[0].mxu0
    %1237 = vmatprep.mubr.f32.mxu0 0.0
    %1238 = vmatmul.mubr.f32.gmra.mrb[0].mxu0 %v1140
    %v1239 = vpop.f32.mrb[0].mxu0
    %v1240 = vadd.f32 0.0, %v1239
    %v1241 = vpop.f32.mrb[0].mxu0
    %1242 = vmatprep.mubr.f32.mxu0 0.0
    %1243 = vmatmul.mubr.f32.gmra.mrb[0].mxu0 %v1143
    %v1244 = vpop.f32.mrb[0].mxu0
    %v1245 = vadd.f32 0.0, %v1244
    %v1246 = vpop.f32.mrb[0].mxu0
    %1247 = vmatprep.mubr.f32.mxu0 0.0
    %1248 = vmatmul.mubr.f32.gmra.mrb[0].mxu0 %v1146
    %v1249 = vpop.f32.mrb[0].mxu0
    %v1250 = vadd.f32 0.0, %v1249
    %v1251 = vpop.f32.mrb[0].mxu0
    %1252 = vdwg.mxu0
    %v1254 = vsel %vm291, %v1001, 0
    %v1257 = vsel %vm291, %v1002, 0
    %v1260 = vsel %vm291, %v1003, 0
    %v1263 = vsel %vm291, %v1004, 0
    %v1266 = vsel %vm291, %v1005, 0
    %v1269 = vsel %vm291, %v1006, 0
    %v1272 = vsel %vm291, %v1007, 0
    %v1275 = vsel %vm291, %v1008, 0
    %1277 = vmatprep.subr.mxu0 0.0
    %1278 = vmatpush1.msra.mxu0 %v963
    %1279 = vmatprep.subr.mxu0 0.0
    %1280 = vmatpush1.msra.mxu0 %v968
    %1281 = vmatprep.subr.mxu0 0.0
    %1282 = vmatpush1.msra.mxu0 %v973
    %1283 = vmatprep.subr.mxu0 0.0
    %1284 = vmatpush1.msra.mxu0 %v978
    %1285 = vmatprep.subr.mxu0 0.0
    %1286 = vmatpush1.msra.mxu0 %v983
    %1287 = vmatprep.subr.mxu0 0.0
    %1288 = vmatpush1.msra.mxu0 %v988
    %1289 = vmatprep.subr.mxu0 0.0
    %1290 = vmatpush1.msra.mxu0 %v993
    %1291 = vmatprep.subr.mxu0 0.0
    %1292 = vmatpush1.msra.mxu0 %v998
    %1293 = vmatprep.subr.mxu0 0.0
    %1294 = vmatpush1.msra.mxu0 0.0
    %1295 = vmatprep.subr.mxu0 0.0
    %1296 = vmatpush1.msra.mxu0 0.0
    %1297 = vmatprep.subr.mxu0 0.0
    %1298 = vmatpush1.msra.mxu0 0.0
    %1299 = vmatprep.subr.mxu0 0.0
    %1300 = vmatpush1.msra.mxu0 0.0
    %1301 = vmatprep.subr.mxu0 0.0
    %1302 = vmatpush1.msra.mxu0 0.0
    %1303 = vmatprep.subr.mxu0 0.0
    %1304 = vmatpush1.msra.mxu0 0.0
    %1305 = vmatprep.subr.mxu0 0.0
    %1306 = vmatpush1.msra.mxu0 0.0
    %1307 = vmatprep.subr.mxu0 0.0
    %1308 = vmatpush1.msra.mxu0 0.0
    %1309 = vmatprep.subr.mxu0 0.0
    %1310 = vmatpush1.msra.mxu0 0.0
    %1311 = vmatprep.subr.mxu0 0.0
    %1312 = vmatpush1.msra.mxu0 0.0
    %1313 = vmatprep.subr.mxu0 0.0
    %1314 = vmatpush1.msra.mxu0 0.0
    %1315 = vmatprep.subr.mxu0 0.0
    %1316 = vmatpush1.msra.mxu0 0.0
    %1317 = vmatprep.subr.mxu0 0.0
    %1318 = vmatpush1.msra.mxu0 0.0
    %1319 = vmatprep.subr.mxu0 0.0
    %1320 = vmatpush1.msra.mxu0 0.0
    %1321 = vmatprep.subr.mxu0 0.0
    %1322 = vmatpush1.msra.mxu0 0.0
    %1323 = vmatprep.subr.mxu0 0.0
    %1324 = vmatpush1.msra.mxu0 0.0
    %1325 = vmatprep.subr.mxu0 0.0
    %1326 = vmatpush1.msra.mxu0 0.0
    %1327 = vmatprep.subr.mxu0 0.0
    %1328 = vmatpush1.msra.mxu0 0.0
    %1329 = vmatprep.subr.mxu0 0.0
    %1330 = vmatpush1.msra.mxu0 0.0
    %1331 = vmatprep.subr.mxu0 0.0
    %1332 = vmatpush1.msra.mxu0 0.0
    %1333 = vmatprep.subr.mxu0 0.0
    %1334 = vmatpush1.msra.mxu0 0.0
    %1335 = vmatprep.subr.mxu0 0.0
    %1336 = vmatpush1.msra.mxu0 0.0
    %1337 = vmatprep.subr.mxu0 0.0
    %1338 = vmatpush1.msra.mxu0 0.0
    %1339 = vmatprep.subr.mxu0 0.0
    %1340 = vmatpush1.msra.mxu0 0.0
    %1341 = vmatprep.mubr.f32.mxu0 0.0
    %1342 = vmatmul.mubr.f32.gmra.mrb[0].mxu0 %v1254
    %v1343 = vpop.f32.mrb[0].mxu0
    %v1344 = vadd.f32 %v1215, %v1343
    %v1345 = vpop.f32.mrb[0].mxu0
    %1346 = vmatprep.mubr.f32.mxu0 0.0
    %1347 = vmatmul.mubr.f32.gmra.mrb[0].mxu0 %v1257
    %v1348 = vpop.f32.mrb[0].mxu0
    %v1349 = vadd.f32 %v1220, %v1348
    %v1350 = vpop.f32.mrb[0].mxu0
    %1351 = vmatprep.mubr.f32.mxu0 0.0
    %1352 = vmatmul.mubr.f32.gmra.mrb[0].mxu0 %v1260
    %v1353 = vpop.f32.mrb[0].mxu0
    %v1354 = vadd.f32 %v1225, %v1353
    %v1355 = vpop.f32.mrb[0].mxu0
    %1356 = vmatprep.mubr.f32.mxu0 0.0
    %1357 = vmatmul.mubr.f32.gmra.mrb[0].mxu0 %v1263
    %v1358 = vpop.f32.mrb[0].mxu0
    %v1359 = vadd.f32 %v1230, %v1358
    %v1360 = vpop.f32.mrb[0].mxu0
    %1361 = vmatprep.mubr.f32.mxu0 0.0
    %1362 = vmatmul.mubr.f32.gmra.mrb[0].mxu0 %v1266
    %v1363 = vpop.f32.mrb[0].mxu0
    %v1364 = vadd.f32 %v1235, %v1363
    %v1365 = vpop.f32.mrb[0].mxu0
    %1366 = vmatprep.mubr.f32.mxu0 0.0
    %1367 = vmatmul.mubr.f32.gmra.mrb[0].mxu0 %v1269
    %v1368 = vpop.f32.mrb[0].mxu0
    %v1369 = vadd.f32 %v1240, %v1368
    %v1370 = vpop.f32.mrb[0].mxu0
    %1371 = vmatprep.mubr.f32.mxu0 0.0
    %1372 = vmatmul.mubr.f32.gmra.mrb[0].mxu0 %v1272
    %v1373 = vpop.f32.mrb[0].mxu0
    %v1374 = vadd.f32 %v1245, %v1373
    %v1375 = vpop.f32.mrb[0].mxu0
    %1376 = vmatprep.mubr.f32.mxu0 0.0
    %1377 = vmatmul.mubr.f32.gmra.mrb[0].mxu0 %v1275
    %v1378 = vpop.f32.mrb[0].mxu0
    %v1379 = vadd.f32 %v1250, %v1378
    %v1380 = vpop.f32.mrb[0].mxu0
    %1381 = vdwg.mxu0
    %v1382 = vld [vmem:[%s550] sm:$0xff]
    %v1383 = vld [vmem:[%s550 + $0x8] sm:$0xff]
    %1384 = vmatprep.subr.mxu0 0.0
    %1385 = vmatpush1.msra.mxu0 %v1382
    %1386 = vmatprep.subr.mxu0 0.0
    %1387 = vmatpush1.msra.mxu0 %v1383
    %1388 = vmatprep.subr.mxu0 0.0
    %1389 = vmatpush1.msra.mxu0 0.0
    %1390 = vmatprep.subr.mxu0 0.0
    %1391 = vmatpush1.msra.mxu0 0.0
    %1392 = vmatprep.subr.mxu0 0.0
    %1393 = vmatpush1.msra.mxu0 0.0
    %1394 = vmatprep.subr.mxu0 0.0
    %1395 = vmatpush1.msra.mxu0 0.0
    %1396 = vmatprep.subr.mxu0 0.0
    %1397 = vmatpush1.msra.mxu0 0.0
    %1398 = vmatprep.subr.mxu0 0.0
    %1399 = vmatpush1.msra.mxu0 0.0
    %1400 = vmatprep.subr.mxu0 0.0
    %1401 = vmatpush1.msra.mxu0 0.0
    %1402 = vmatprep.subr.mxu0 0.0
    %1403 = vmatpush1.msra.mxu0 0.0
    %1404 = vmatprep.subr.mxu0 0.0
    %1405 = vmatpush1.msra.mxu0 0.0
    %1406 = vmatprep.subr.mxu0 0.0
    %1407 = vmatpush1.msra.mxu0 0.0
    %1408 = vmatprep.subr.mxu0 0.0
    %1409 = vmatpush1.msra.mxu0 0.0
    %1410 = vmatprep.subr.mxu0 0.0
    %1411 = vmatpush1.msra.mxu0 0.0
    %1412 = vmatprep.subr.mxu0 0.0
    %1413 = vmatpush1.msra.mxu0 0.0
    %1414 = vmatprep.subr.mxu0 0.0
    %1415 = vmatpush1.msra.mxu0 0.0
    %1416 = vmatprep.subr.mxu0 0.0
    %1417 = vmatpush1.msra.mxu0 0.0
    %1418 = vmatprep.subr.mxu0 0.0
    %1419 = vmatpush1.msra.mxu0 0.0
    %1420 = vmatprep.subr.mxu0 0.0
    %1421 = vmatpush1.msra.mxu0 0.0
    %1422 = vmatprep.subr.mxu0 0.0
    %1423 = vmatpush1.msra.mxu0 0.0
    %1424 = vmatprep.subr.mxu0 0.0
    %1425 = vmatpush1.msra.mxu0 0.0
    %1426 = vmatprep.subr.mxu0 0.0
    %1427 = vmatpush1.msra.mxu0 0.0
    %1428 = vmatprep.subr.mxu0 0.0
    %1429 = vmatpush1.msra.mxu0 0.0
    %1430 = vmatprep.subr.mxu0 0.0
    %1431 = vmatpush1.msra.mxu0 0.0
    %1432 = vmatprep.subr.mxu0 0.0
    %1433 = vmatpush1.msra.mxu0 0.0
    %1434 = vmatprep.subr.mxu0 0.0
    %1435 = vmatpush1.msra.mxu0 0.0
    %1436 = vmatprep.subr.mxu0 0.0
    %1437 = vmatpush1.msra.mxu0 0.0
    %1438 = vmatprep.subr.mxu0 0.0
    %1439 = vmatpush1.msra.mxu0 0.0
    %1440 = vmatprep.subr.mxu0 0.0
    %1441 = vmatpush1.msra.mxu0 0.0
    %1442 = vmatprep.subr.mxu0 0.0
    %1443 = vmatpush1.msra.mxu0 0.0
    %1444 = vmatprep.subr.mxu0 0.0
    %1445 = vmatpush1.msra.mxu0 0.0
    %1446 = vmatprep.subr.mxu0 0.0
    %1447 = vmatpush1.msra.mxu0 0.0
    %1448 = vmatprep.mubr.f32.mxu0 0.0
    %1449 = vmatmul.mubr.f32.gmra.mrb[0].mxu0 %v873
    %v1450 = vpop.f32.mrb[0].mxu0
    %v1451 = vadd.f32 0.0, %v1450
    %v1452 = vpop.f32.mrb[0].mxu0
    %1453 = vmatprep.mubr.f32.mxu0 0.0
    %1454 = vmatmul.mubr.f32.gmra.mrb[0].mxu0 %v876
    %v1455 = vpop.f32.mrb[0].mxu0
    %v1456 = vadd.f32 0.0, %v1455
    %v1457 = vpop.f32.mrb[0].mxu0
    %1458 = vmatprep.mubr.f32.mxu0 0.0
    %1459 = vmatmul.mubr.f32.gmra.mrb[0].mxu0 %v879
    %v1460 = vpop.f32.mrb[0].mxu0
    %v1461 = vadd.f32 0.0, %v1460
    %v1462 = vpop.f32.mrb[0].mxu0
    %1463 = vmatprep.mubr.f32.mxu0 0.0
    %1464 = vmatmul.mubr.f32.gmra.mrb[0].mxu0 %v882
    %v1465 = vpop.f32.mrb[0].mxu0
    %v1466 = vadd.f32 0.0, %v1465
    %v1467 = vpop.f32.mrb[0].mxu0
    %1468 = vmatprep.mubr.f32.mxu0 0.0
    %1469 = vmatmul.mubr.f32.gmra.mrb[0].mxu0 %v885
    %v1470 = vpop.f32.mrb[0].mxu0
    %v1471 = vadd.f32 0.0, %v1470
    %v1472 = vpop.f32.mrb[0].mxu0
    %1473 = vmatprep.mubr.f32.mxu0 0.0
    %1474 = vmatmul.mubr.f32.gmra.mrb[0].mxu0 %v888
    %v1475 = vpop.f32.mrb[0].mxu0
    %v1476 = vadd.f32 0.0, %v1475
    %v1477 = vpop.f32.mrb[0].mxu0
    %1478 = vmatprep.mubr.f32.mxu0 0.0
    %1479 = vmatmul.mubr.f32.gmra.mrb[0].mxu0 %v891
    %v1480 = vpop.f32.mrb[0].mxu0
    %v1481 = vadd.f32 0.0, %v1480
    %v1482 = vpop.f32.mrb[0].mxu0
    %1483 = vmatprep.mubr.f32.mxu0 0.0
    %1484 = vmatmul.mubr.f32.gmra.mrb[0].mxu0 %v894
    %v1485 = vpop.f32.mrb[0].mxu0
    %v1486 = vadd.f32 0.0, %v1485
    %v1487 = vpop.f32.mrb[0].mxu0
    %1488 = vdwg.mxu0
    %v1489 = vld [vmem:[%s658] sm:$0xff]
    %v1490 = vld [vmem:[%s658 + $0x8] sm:$0xff]
    %v1491 = vld [vmem:[%s658 + $0x10] sm:$0xff]
    %v1492 = vld [vmem:[%s658 + $0x18] sm:$0xff]
    %v1493 = vld [vmem:[%s658 + $0x20] sm:$0xff]
    %v1494 = vld [vmem:[%s658 + $0x28] sm:$0xff]
    %v1495 = vld [vmem:[%s658 + $0x30] sm:$0xff]
    %v1496 = vld [vmem:[%s658 + $0x38] sm:$0xff]
    %v1498 = vsel %vm291, %v1489, 0
    %v1501 = vsel %vm291, %v1490, 0
    %v1504 = vsel %vm291, %v1491, 0
    %v1507 = vsel %vm291, %v1492, 0
    %v1510 = vsel %vm291, %v1493, 0
    %v1513 = vsel %vm291, %v1494, 0
    %v1516 = vsel %vm291, %v1495, 0
    %v1519 = vsel %vm291, %v1496, 0
    %1521 = vmatprep.subr.mxu0 0.0
    %1522 = vmatpush1.msra.mxu0 %v1451
    %1523 = vmatprep.subr.mxu0 0.0
    %1524 = vmatpush1.msra.mxu0 %v1456
    %1525 = vmatprep.subr.mxu0 0.0
    %1526 = vmatpush1.msra.mxu0 %v1461
    %1527 = vmatprep.subr.mxu0 0.0
    %1528 = vmatpush1.msra.mxu0 %v1466
    %1529 = vmatprep.subr.mxu0 0.0
    %1530 = vmatpush1.msra.mxu0 %v1471
    %1531 = vmatprep.subr.mxu0 0.0
    %1532 = vmatpush1.msra.mxu0 %v1476
    %1533 = vmatprep.subr.mxu0 0.0
    %1534 = vmatpush1.msra.mxu0 %v1481
    %1535 = vmatprep.subr.mxu0 0.0
    %1536 = vmatpush1.msra.mxu0 %v1486
    %1537 = vmatprep.subr.mxu0 0.0
    %1538 = vmatpush1.msra.mxu0 0.0
    %1539 = vmatprep.subr.mxu0 0.0
    %1540 = vmatpush1.msra.mxu0 0.0
    %1541 = vmatprep.subr.mxu0 0.0
    %1542 = vmatpush1.msra.mxu0 0.0
    %1543 = vmatprep.subr.mxu0 0.0
    %1544 = vmatpush1.msra.mxu0 0.0
    %1545 = vmatprep.subr.mxu0 0.0
    %1546 = vmatpush1.msra.mxu0 0.0
    %1547 = vmatprep.subr.mxu0 0.0
    %1548 = vmatpush1.msra.mxu0 0.0
    %1549 = vmatprep.subr.mxu0 0.0
    %1550 = vmatpush1.msra.mxu0 0.0
    %1551 = vmatprep.subr.mxu0 0.0
    %1552 = vmatpush1.msra.mxu0 0.0
    %1553 = vmatprep.subr.mxu0 0.0
    %1554 = vmatpush1.msra.mxu0 0.0
    %1555 = vmatprep.subr.mxu0 0.0
    %1556 = vmatpush1.msra.mxu0 0.0
    %1557 = vmatprep.subr.mxu0 0.0
    %1558 = vmatpush1.msra.mxu0 0.0
    %1559 = vmatprep.subr.mxu0 0.0
    %1560 = vmatpush1.msra.mxu0 0.0
    %1561 = vmatprep.subr.mxu0 0.0
    %1562 = vmatpush1.msra.mxu0 0.0
    %1563 = vmatprep.subr.mxu0 0.0
    %1564 = vmatpush1.msra.mxu0 0.0
    %1565 = vmatprep.subr.mxu0 0.0
    %1566 = vmatpush1.msra.mxu0 0.0
    %1567 = vmatprep.subr.mxu0 0.0
    %1568 = vmatpush1.msra.mxu0 0.0
    %1569 = vmatprep.subr.mxu0 0.0
    %1570 = vmatpush1.msra.mxu0 0.0
    %1571 = vmatprep.subr.mxu0 0.0
    %1572 = vmatpush1.msra.mxu0 0.0
    %1573 = vmatprep.subr.mxu0 0.0
    %1574 = vmatpush1.msra.mxu0 0.0
    %1575 = vmatprep.subr.mxu0 0.0
    %1576 = vmatpush1.msra.mxu0 0.0
    %1577 = vmatprep.subr.mxu0 0.0
    %1578 = vmatpush1.msra.mxu0 0.0
    %1579 = vmatprep.subr.mxu0 0.0
    %1580 = vmatpush1.msra.mxu0 0.0
    %1581 = vmatprep.subr.mxu0 0.0
    %1582 = vmatpush1.msra.mxu0 0.0
    %1583 = vmatprep.subr.mxu0 0.0
    %1584 = vmatpush1.msra.mxu0 0.0
    %1585 = vmatprep.mubr.f32.mxu0 0.0
    %1586 = vmatmul.mubr.f32.gmra.mrb[0].mxu0 %v1498
    %v1587 = vpop.f32.mrb[0].mxu0
    %v1588 = vadd.f32 0.0, %v1587
    %v1589 = vpop.f32.mrb[0].mxu0
    %1590 = vmatprep.mubr.f32.mxu0 0.0
    %1591 = vmatmul.mubr.f32.gmra.mrb[0].mxu0 %v1501
    %v1592 = vpop.f32.mrb[0].mxu0
    %v1593 = vadd.f32 0.0, %v1592
    %v1594 = vpop.f32.mrb[0].mxu0
    %1595 = vmatprep.mubr.f32.mxu0 0.0
    %1596 = vmatmul.mubr.f32.gmra.mrb[0].mxu0 %v1504
    %v1597 = vpop.f32.mrb[0].mxu0
    %v1598 = vadd.f32 0.0, %v1597
    %v1599 = vpop.f32.mrb[0].mxu0
    %1600 = vmatprep.mubr.f32.mxu0 0.0
    %1601 = vmatmul.mubr.f32.gmra.mrb[0].mxu0 %v1507
    %v1602 = vpop.f32.mrb[0].mxu0
    %v1603 = vadd.f32 0.0, %v1602
    %v1604 = vpop.f32.mrb[0].mxu0
    %1605 = vmatprep.mubr.f32.mxu0 0.0
    %1606 = vmatmul.mubr.f32.gmra.mrb[0].mxu0 %v1510
    %v1607 = vpop.f32.mrb[0].mxu0
    %v1608 = vadd.f32 0.0, %v1607
    %v1609 = vpop.f32.mrb[0].mxu0
    %1610 = vmatprep.mubr.f32.mxu0 0.0
    %1611 = vmatmul.mubr.f32.gmra.mrb[0].mxu0 %v1513
    %v1612 = vpop.f32.mrb[0].mxu0
    %v1613 = vadd.f32 0.0, %v1612
    %v1614 = vpop.f32.mrb[0].mxu0
    %1615 = vmatprep.mubr.f32.mxu0 0.0
    %1616 = vmatmul.mubr.f32.gmra.mrb[0].mxu0 %v1516
    %v1617 = vpop.f32.mrb[0].mxu0
    %v1618 = vadd.f32 0.0, %v1617
    %v1619 = vpop.f32.mrb[0].mxu0
    %1620 = vmatprep.mubr.f32.mxu0 0.0
    %1621 = vmatmul.mubr.f32.gmra.mrb[0].mxu0 %v1519
    %v1622 = vpop.f32.mrb[0].mxu0
    %v1623 = vadd.f32 0.0, %v1622
    %v1624 = vpop.f32.mrb[0].mxu0
    %1625 = vdwg.mxu0
    %v1626 = vadd.f32 %v1344, %v1588
    %v1627 = vadd.f32 %v1349, %v1593
    %v1628 = vadd.f32 %v1354, %v1598
    %v1629 = vadd.f32 %v1359, %v1603
    %v1630 = vadd.f32 %v1364, %v1608
    %v1631 = vadd.f32 %v1369, %v1613
    %v1632 = vadd.f32 %v1374, %v1618
    %v1633 = vadd.f32 %v1379, %v1623
    %v1634 = vadd.f32 %v1626, %v807
    %v1635 = vadd.f32 %v1627, %v812
    %v1636 = vadd.f32 %v1628, %v817
    %v1637 = vadd.f32 %v1629, %v822
    %v1638 = vadd.f32 %v1630, %v827
    %v1639 = vadd.f32 %v1631, %v832
    %v1640 = vadd.f32 %v1632, %v837
    %v1641 = vadd.f32 %v1633, %v842
    %s1642 = scalar_lea.vmem [#allocation2], 64
    %1643 = vst.msk [vmem:[%s1642] sm:$0xff] %vm852, %v1634
    %1644 = vst.msk [vmem:[%s1642 + $0x8] sm:$0xff] %vm852, %v1635
    %1645 = vst.msk [vmem:[%s1642 + $0x10] sm:$0xff] %vm852, %v1636
    %1646 = vst.msk [vmem:[%s1642 + $0x18] sm:$0xff] %vm852, %v1637
    %1647 = vst.msk [vmem:[%s1642 + $0x20] sm:$0xff] %vm852, %v1638
    %1648 = vst.msk [vmem:[%s1642 + $0x28] sm:$0xff] %vm852, %v1639
    %1649 = vst.msk [vmem:[%s1642 + $0x30] sm:$0xff] %vm852, %v1640
    %1650 = vst.msk [vmem:[%s1642 + $0x38] sm:$0xff] %vm852, %v1641
    // Predicated region
    $region18: #{conv_downsample2d.1} parent=1 // pred_check
      _
    $region19: #{conv_downsample2d.1} parent=1 // pred_check_branch
      %1652 = sbr.rel (0) target = $region21
    $region20: #{conv_downsample2d.1} parent=1 // pred_region
      %s1654 = ssub.s32 2048, 2048
      %1655 = vsyncadd [#allocation3], %s1654
      %s1656 = sshll.u32 [#allocation2], 4
      %s1657 = int_to_ptr.vmem [resolvable:$true] %s1656
      %1662 = dma.vmem_to_hbm [thread:$0]  %s1657, 2048, %s4, [#allocation3], 128, 128, 8
    $region21: #{conv_downsample2d.1} parent=1 // pred_fallthru
      _
    // Predicated region
    $region22: #{conv_downsample2d.1} parent=1 // pred_check
      _
    $region23: #{conv_downsample2d.1} parent=1 // pred_check_branch
      %1664 = sbr.rel (0) target = $region25
    $region24: #{conv_downsample2d.1} parent=1 // pred_region
      %1665 = dma.done [#allocation3], 2048
    $region25: #{conv_downsample2d.1} parent=1 // pred_fallthru
      _
    %1666 = vsyncpa [#allocation3], 1

</llo_original>
